<compile_context>
chip_gen: v6e
topology: v6e:2x2x1
jax: 0.10.0
libtpu: 0.0.40
codegen_flags: <defaults>
</compile_context>

<pallas_src>
import functools

import jax
import jax.numpy as jnp
import numpy as np
from jax.experimental import pallas as pl
from jax.experimental.pallas import tpu as pltpu


def _round_up(x, m):
    return ((x + m - 1) // m) * m


def conv_skip_kernel(a_ref, xh_ref, xl_ref, xi_ref, mg_ref, wl_ref, wt_ref, bt_ref,
                     o_ref, ax_ref, *, tk, in_size):
    """Row-tile x neighbour-tile kernel.

    Inner step (k axis, 'arbitrary'):  ax += A_tile @ [X | 1]   (bf16 MXU, f32 accumulation).
    Finalize  (k == last):             degree / mask / Laplacian / skip / bias / ReLU.
    """
    k = pl.program_id(1)

    @pl.when(k == 0)
    def _init():
        ax_ref[...] = jnp.zeros_like(ax_ref)

    # int8 {0,1} adjacency tile -> bf16 for the MXU (values exact).  The cast is routed through
    # f32 (i8 -> f32 -> bf16) because both converts lower on every TPU generation; the chain is
    # element-wise and the loop stays bound by the 1-byte/elem A DMA either way.
    a_bf = a_ref[...].astype(jnp.float32).astype(jnp.bfloat16)

    # Neighbour features are fully VMEM-resident; slice the k-th (tk, in+1) chunk in place
    # instead of re-streaming a fresh tile from HBM once per row tile.
    col0 = pl.multiple_of(k * tk, tk)
    xh = xh_ref[pl.ds(col0, tk), :]
    xl = xl_ref[pl.ds(col0, tk), :]

    # bf16 hi/lo split keeps ~f32 accuracy while staying on the bf16 MXU path; the trailing
    # ones-column of X_hi makes column `in_size` of the accumulator the node degree, so the
    # degree is produced by the same A pass (no separate wrapper-side reduction over A).
    ax_ref[...] += (jnp.dot(a_bf, xh, preferred_element_type=jnp.float32)
                    + jnp.dot(a_bf, xl, preferred_element_type=jnp.float32))

    @pl.when(k == pl.num_programs(1) - 1)
    def _finalize():
        agg = ax_ref[:, :in_size]                         # A @ X           [tm, in_size]
        deg = ax_ref[:, in_size:in_size + 1]              # A @ 1 = degree  [tm, 1]
        nz = (deg > 0.0).astype(jnp.float32)              # isolated-node mask (deg == 0 guard)
        inv = nz / jnp.maximum(deg, 1.0)                  # exact 1/deg, 0 for isolated nodes
        # Normalized Laplacian folded through the linear layer (b_lin cancels exactly):
        #   H_i - mean_j H_j = (X_i - (A @ X)_i / deg_i) @ W_lin ;  == 0 for isolated nodes,
        # matching PyTorch's scatter.add over an empty neighbourhood.
        diff = (xi_ref[...] - agg * inv) * nz
        lap = jnp.dot(diff, wl_ref[...], preferred_element_type=jnp.float32)
        skip = jnp.dot(mg_ref[...], wt_ref[...], preferred_element_type=jnp.float32) + bt_ref[...]
        o_ref[...] = jnp.maximum(lap + skip, 0.0).astype(o_ref.dtype)


def conv_skip(data, merge, adj, w_lin, b_lin, w_tr, b_tr, *, tm=512, tk=1024):
    """data: [N, in], merge: [N, merge], adj: [N, N] {0,1}; weights stored as [in, out] / [1, out].

    b_lin is accepted for interface parity with nn.Linear but provably cancels under the
    normalized Laplacian action (and deg==0 rows are 0), so it is never sent to the kernel.
    """
    del b_lin  # exactly cancelled by H_i - mean_j H_j; isolated nodes yield 0 regardless

    N, in_size = data.shape
    merge_size = merge.shape[1]
    out_size = w_lin.shape[1]
    assert adj.shape == (N, N)
    assert w_lin.shape == (in_size, out_size) and w_tr.shape == (merge_size, out_size)
    assert tm % 32 == 0 and tk % 128 == 0, "tm: int8 sublane multiple (32); tk: lane multiple (128)"

    in_p1 = in_size + 1                                   # features + fused degree column

    # Independent per-axis padding (no lcm coupling): rows -> TM multiple, neighbour cols -> TK
    # multiple, output feature dim -> lane-dense multiple of 128.
    rows_pad = _round_up(N, tm)
    cols_pad = _round_up(N, tk)
    out_p = _round_up(out_size, 128)
    pr, pc, po = rows_pad - N, cols_pad - N, out_p - out_size

    # Adjacency stored int8 (0/1 exact) — the single O(N^2) HBM stream.  (fp8 e4m3 on v7x would
    # be byte-equivalent; int8 converts portably on all generations.)
    adj_i8 = jnp.pad(adj.astype(jnp.int8), ((0, pr), (0, pc)))

    # Neighbour-side features augmented with a ones column (degree fusion), bf16 hi/lo split.
    x32 = data.astype(jnp.float32)
    x_aug = jnp.concatenate([x32, jnp.ones((N, 1), jnp.float32)], axis=1)     # [N, in+1]
    x_hi = x_aug.astype(jnp.bfloat16)
    x_lo = (x_aug - x_hi.astype(jnp.float32)).astype(jnp.bfloat16)            # ones col -> exactly 0
    xh_p = jnp.pad(x_hi, ((0, pc), (0, 0)))
    xl_p = jnp.pad(x_lo, ((0, pc), (0, 0)))

    # Row-side (own) features, skip features, weights — all O(N*d), kept f32.
    xi_p = jnp.pad(x32, ((0, pr), (0, 0)))
    mg_p = jnp.pad(merge.astype(jnp.float32), ((0, pr), (0, 0)))
    wl_p = jnp.pad(w_lin.astype(jnp.float32), ((0, 0), (0, po)))
    wt_p = jnp.pad(w_tr.astype(jnp.float32), ((0, 0), (0, po)))
    bt_p = jnp.pad(b_tr.astype(jnp.float32), ((0, 0), (0, po)))

    # (row tiles, neighbour/reduction tiles) — reduction axis last, "arbitrary".
    grid = (rows_pad // tm, cols_pad // tk)

    in_specs = [
        # A tile (int8, double-buffered).  If DMA latency is still exposed after enlarging
        # tiles, add pipeline_mode=pl.Buffered(3) here.
        pl.BlockSpec((tm, tk), lambda i, k: (i, k)),
        pl.BlockSpec((cols_pad, in_p1), lambda i, k: (0, 0)),    # [X|1] hi  (VMEM resident)
        pl.BlockSpec((cols_pad, in_p1), lambda i, k: (0, 0)),    # [X|0] lo  (VMEM resident)
        pl.BlockSpec((tm, in_size), lambda i, k: (i, 0)),        # X row tile (own feats, f32)
        pl.BlockSpec((tm, merge_size), lambda i, k: (i, 0)),     # merge row tile
        pl.BlockSpec((in_size, out_p), lambda i, k: (0, 0)),     # W_lin (VMEM resident)
        pl.BlockSpec((merge_size, out_p), lambda i, k: (0, 0)),  # W_tr  (VMEM resident)
        pl.BlockSpec((1, out_p), lambda i, k: (0, 0)),           # b_tr  (VMEM resident)
    ]
    out_spec = pl.BlockSpec((tm, out_p), lambda i, k: (i, 0))    # written only at k == last

    kernel = functools.partial(conv_skip_kernel, tk=tk, in_size=in_size)

    out_padded = pl.pallas_call(
        kernel,
        out_shape=jax.ShapeDtypeStruct((rows_pad, out_p), jnp.float32),
        grid_spec=pltpu.PrefetchScalarGridSpec(
            num_scalar_prefetch=0,
            grid=grid,
            in_specs=in_specs,
            out_specs=out_spec,
            scratch_shapes=[pltpu.VMEM((tm, in_p1), jnp.float32)],  # A @ [X|1] accumulator
        ),
        # Row axis "parallel" -> sharded across v7x's 2 TensorCores (harmless on v5e/v6e);
        # neighbour axis is the reduction -> "arbitrary".  VMEM use at TM=512/TK=1024 is ~2 MiB
        # (A double-buffer 1 MiB + resident [X|1] + output tile), far under every generation's
        # scoped default; raise vmem_limit_bytes only if TK/resident X are pushed much larger
        # (watch v7x's 64 MiB physical VMEM).
        compiler_params=pltpu.CompilerParams(
            dimension_semantics=("parallel", "arbitrary")),
    )(adj_i8, xh_p, xl_p, xi_p, mg_p, wl_p, wt_p, bt_p)

    return out_padded[:N, :out_size]


def conv_skip_reference(data, merge, adj, w_lin, b_lin, w_tr, b_tr):
    """Straightforward JAX transcription of the PyTorch module (f32-accurate matmuls)."""
    hp = jax.lax.Precision.HIGHEST
    h = jnp.dot(data, w_lin, precision=hp) + b_lin
    deg = jnp.sum(adj, axis=1, keepdims=True)
    mean_neigh = jnp.dot(adj, h, precision=hp) / jnp.maximum(deg, 1.0)
    lap = jnp.where(deg > 0, h - mean_neigh, 0.0)   # empty neighbourhood -> 0, like scatter.add
    m = jnp.dot(merge, w_tr, precision=hp) + b_tr
    return jnp.maximum(lap + m, 0.0)


if __name__ == "__main__":
    # Small deterministic problem: 200 nodes, in_size=16, merge_size=8, out_size=32
    # (rows/cols padded to 256, out padded to a lane-dense 128 inside the wrapper).
    N, in_size, merge_size, out_size = 200, 16, 8, 32

    key = jax.random.PRNGKey(0)
    k_data, k_merge, k_adj, k_wl, k_bl, k_wt, k_bt = jax.random.split(key, 7)

    data = jax.random.normal(k_data, (N, in_size), dtype=jnp.float32)
    merge = jax.random.normal(k_merge, (N, merge_size), dtype=jnp.float32)

    # Deterministic symmetric 0/1 adjacency, no self loops; ring edges give degree >= 1 ...
    raw = jax.random.uniform(k_adj, (N, N)) > 0.5
    adj = jnp.triu(raw.astype(jnp.float32), k=1)
    adj = adj + adj.T
    ring = jnp.eye(N, dtype=jnp.float32)
    adj = jnp.clip(adj + jnp.roll(ring, 1, axis=1) + jnp.roll(ring, -1, axis=1), 0.0, 1.0)
    # ... except node N-1, which we isolate on purpose to exercise the deg==0 path
    # (scatter.add over an empty neighbourhood -> Laplacian term is 0).
    adj = adj.at[N - 1, :].set(0.0)
    adj = adj.at[:, N - 1].set(0.0)

    # nn.Linear(in, out).weight has shape [out, in]; we store the transpose [in, out].
    w_lin = jax.random.normal(k_wl, (in_size, out_size), dtype=jnp.float32) * 0.1
    b_lin = jax.random.normal(k_bl, (1, out_size), dtype=jnp.float32) * 0.1
    w_tr = jax.random.normal(k_wt, (merge_size, out_size), dtype=jnp.float32) * 0.1
    b_tr = jax.random.normal(k_bt, (1, out_size), dtype=jnp.float32) * 0.1

    # Small tiles so the test exercises multi-tile accumulation (grid = (2, 2)) plus padding.
    out = conv_skip(data, merge, adj, w_lin, b_lin, w_tr, b_tr, tm=128, tk=128)
    out = jax.block_until_ready(out)

    ref = conv_skip_reference(data, merge, adj, w_lin, b_lin, w_tr, b_tr)
    # The bf16 hi/lo split of X leaves a ~2^-16 relative residual on the aggregated features,
    # so compare at 1e-4 (still ~100x tighter than a plain single-bf16 inner matmul would allow).
    np.testing.assert_allclose(np.asarray(out), np.asarray(ref), rtol=1e-4, atol=1e-4)

    print("KERNEL_OK")
</pallas_src>

<mosaic_0001>
module attributes {stable_mosaic.version = 11 : i64} {
  func.func @conv_skip_kernel(%arg0: i32, %arg1: i32, %arg2: memref<128x128xi8, #tpu.memory_space<vmem>>, %arg3: memref<256x17xbf16, #tpu.memory_space<vmem>>, %arg4: memref<256x17xbf16, #tpu.memory_space<vmem>>, %arg5: memref<128x16xf32, #tpu.memory_space<vmem>>, %arg6: memref<128x8xf32, #tpu.memory_space<vmem>>, %arg7: memref<16x128xf32, #tpu.memory_space<vmem>>, %arg8: memref<8x128xf32, #tpu.memory_space<vmem>>, %arg9: memref<1x128xf32, #tpu.memory_space<vmem>>, %arg10: memref<128x128xf32, #tpu.memory_space<vmem>>, %arg11: memref<128x17xf32, #tpu.memory_space<vmem>>) attributes {dimension_semantics = [#tpu.dimension_semantics<parallel>, #tpu.dimension_semantics<arbitrary>], iteration_bounds = array<i64: 2, 2>, scalar_prefetch = 0 : i64, scratch_operands = 1 : i64, tpu.core_type = #tpu.core_type<tc>, window_params = [{transform_indices = @transform_0, window_bounds = array<i64: 128, 128>}, {pipeline_mode = #tpu.pipeline_mode<synchronous>, transform_indices = @transform_1, window_bounds = array<i64: 256, 17>}, {pipeline_mode = #tpu.pipeline_mode<synchronous>, transform_indices = @transform_2, window_bounds = array<i64: 256, 17>}, {transform_indices = @transform_3, window_bounds = array<i64: 128, 16>}, {transform_indices = @transform_4, window_bounds = array<i64: 128, 8>}, {pipeline_mode = #tpu.pipeline_mode<synchronous>, transform_indices = @transform_5, window_bounds = array<i64: 16, 128>}, {pipeline_mode = #tpu.pipeline_mode<synchronous>, transform_indices = @transform_6, window_bounds = array<i64: 8, 128>}, {pipeline_mode = #tpu.pipeline_mode<synchronous>, transform_indices = @transform_7, window_bounds = array<i64: 1, 128>}, {transform_indices = @transform_8, window_bounds = array<i64: 128, 128>}]} {
    %c0_i32 = arith.constant 0 : i32
    %0 = arith.cmpi eq, %arg1, %c0_i32 : i32
    %1 = arith.extui %0 : i1 to i32
    %c0_i32_0 = arith.constant 0 : i32
    %2 = arith.cmpi ne, %1, %c0_i32_0 : i32
    scf.if %2 {
      %cst_10 = arith.constant 0.000000e+00 : f32
      %21 = vector.broadcast %cst_10 : f32 to vector<128x17xf32>
      %c0_11 = arith.constant 0 : index
      %c0_12 = arith.constant 0 : index
      %22 = vector.load %arg11[%c0_11, %c0_12] : memref<128x17xf32, #tpu.memory_space<vmem>>, vector<128x17xf32>
      tpu.vector_store %arg11[%c0_11, %c0_12], %21 {strides = array<i32>} : memref<128x17xf32, #tpu.memory_space<vmem>>, vector<128x17xf32>,
    } else {
    }
    %c0 = arith.constant 0 : index
    %c0_1 = arith.constant 0 : index
    %3 = vector.load %arg2[%c0, %c0_1] : memref<128x128xi8, #tpu.memory_space<vmem>>, vector<128x128xi8>
    %4 = arith.sitofp %3 : vector<128x128xi8> to vector<128x128xf32>
    %5 = arith.truncf %4 : vector<128x128xf32> to vector<128x128xbf16>
    %c128_i32 = arith.constant 128 : i32
    %6 = arith.muli %arg1, %c128_i32 : i32
    %7 = tpu.assume_multiple %6, 128 : i32
    %8 = arith.index_cast %7 : i32 to index
    %c0_2 = arith.constant 0 : index
    %9 = vector.load %arg3[%8, %c0_2] : memref<256x17xbf16, #tpu.memory_space<vmem>>, vector<128x17xbf16>
    %10 = arith.index_cast %7 : i32 to index
    %c0_3 = arith.constant 0 : index
    %11 = vector.load %arg4[%10, %c0_3] : memref<256x17xbf16, #tpu.memory_space<vmem>>, vector<128x17xbf16>
    %c0_4 = arith.constant 0 : index
    %c0_5 = arith.constant 0 : index
    %12 = vector.load %arg11[%c0_4, %c0_5] : memref<128x17xf32, #tpu.memory_space<vmem>>, vector<128x17xf32>
    %cst = arith.constant dense<0.000000e+00> : vector<128x17xf32>
    %13 = tpu.matmul %5, %9, %cst {dimension_numbers = #tpu.dot_dimension_numbers<[1], [0], [0], [1], [0, 0, 1, 1], [], []>} : vector<128x128xbf16>, vector<128x17xbf16>, vector<128x17xf32> -> vector<128x17xf32>
    %cst_6 = arith.constant dense<0.000000e+00> : vector<128x17xf32>
    %14 = tpu.matmul %5, %11, %cst_6 {dimension_numbers = #tpu.dot_dimension_numbers<[1], [0], [0], [1], [0, 0, 1, 1], [], []>} : vector<128x128xbf16>, vector<128x17xbf16>, vector<128x17xf32> -> vector<128x17xf32>
    %15 = arith.addf %13, %14 : vector<128x17xf32>
    %16 = arith.addf %12, %15 : vector<128x17xf32>
    %c0_7 = arith.constant 0 : index
    %c0_8 = arith.constant 0 : index
    %17 = vector.load %arg11[%c0_7, %c0_8] : memref<128x17xf32, #tpu.memory_space<vmem>>, vector<128x17xf32>
    tpu.vector_store %arg11[%c0_7, %c0_8], %16 {strides = array<i32>} : memref<128x17xf32, #tpu.memory_space<vmem>>, vector<128x17xf32>,
    %c1_i32 = arith.constant 1 : i32
    %18 = arith.cmpi eq, %arg1, %c1_i32 : i32
    %19 = arith.extui %18 : i1 to i32
    %c0_i32_9 = arith.constant 0 : i32
    %20 = arith.cmpi ne, %19, %c0_i32_9 : i32
    scf.if %20 {
      %c0_10 = arith.constant 0 : index
      %c0_11 = arith.constant 0 : index
      %21 = vector.load %arg11[%c0_10, %c0_11] : memref<128x17xf32, #tpu.memory_space<vmem>>, vector<128x16xf32>
      %c0_12 = arith.constant 0 : index
      %c16 = arith.constant 16 : index
      %22 = vector.load %arg11[%c0_12, %c16] : memref<128x17xf32, #tpu.memory_space<vmem>>, vector<128x1xf32>
      %cst_13 = arith.constant 0.000000e+00 : f32
      %23 = vector.broadcast %cst_13 : f32 to vector<128x1xf32>
      %24 = arith.cmpf ogt, %22, %23 : vector<128x1xf32>
      %25 = arith.extui %24 : vector<128x1xi1> to vector<128x1xi32>
      %26 = arith.sitofp %25 : vector<128x1xi32> to vector<128x1xf32>
      %cst_14 = arith.constant 1.000000e+00 : f32
      %27 = vector.broadcast %cst_14 : f32 to vector<128x1xf32>
      %28 = arith.maximumf %22, %27 : vector<128x1xf32>
      %29 = arith.divf %26, %28 : vector<128x1xf32>
      %c0_15 = arith.constant 0 : index
      %c0_16 = arith.constant 0 : index
      %30 = vector.load %arg5[%c0_15, %c0_16] : memref<128x16xf32, #tpu.memory_space<vmem>>, vector<128x16xf32>
      %31 = vector.broadcast %29 : vector<128x1xf32> to vector<128x16xf32>
      %32 = arith.mulf %21, %31 : vector<128x16xf32>
      %33 = arith.subf %30, %32 : vector<128x16xf32>
      %34 = vector.broadcast %26 : vector<128x1xf32> to vector<128x16xf32>
      %35 = arith.mulf %33, %34 : vector<128x16xf32>
      %c0_17 = arith.constant 0 : index
      %c0_18 = arith.constant 0 : index
      %36 = vector.load %arg7[%c0_17, %c0_18] : memref<16x128xf32, #tpu.memory_space<vmem>>, vector<16x128xf32>
      %cst_19 = arith.constant dense<0.000000e+00> : vector<128x128xf32>
      %37 = tpu.matmul %35, %36, %cst_19 {dimension_numbers = #tpu.dot_dimension_numbers<[1], [0], [0], [1], [0, 0, 1, 1], [], []>} : vector<128x16xf32>, vector<16x128xf32>, vector<128x128xf32> -> vector<128x128xf32>
      %c0_20 = arith.constant 0 : index
      %c0_21 = arith.constant 0 : index
      %38 = vector.load %arg6[%c0_20, %c0_21] : memref<128x8xf32, #tpu.memory_space<vmem>>, vector<128x8xf32>
      %c0_22 = arith.constant 0 : index
      %c0_23 = arith.constant 0 : index
      %39 = vector.load %arg8[%c0_22, %c0_23] : memref<8x128xf32, #tpu.memory_space<vmem>>, vector<8x128xf32>
      %cst_24 = arith.constant dense<0.000000e+00> : vector<128x128xf32>
      %40 = tpu.matmul %38, %39, %cst_24 {dimension_numbers = #tpu.dot_dimension_numbers<[1], [0], [0], [1], [0, 0, 1, 1], [], []>} : vector<128x8xf32>, vector<8x128xf32>, vector<128x128xf32> -> vector<128x128xf32>
      %c0_25 = arith.constant 0 : index
      %c0_26 = arith.constant 0 : index
      %41 = vector.load %arg9[%c0_25, %c0_26] : memref<1x128xf32, #tpu.memory_space<vmem>>, vector<1x128xf32>
      %42 = vector.broadcast %41 : vector<1x128xf32> to vector<128x128xf32>
      %43 = arith.addf %40, %42 : vector<128x128xf32>
      %44 = arith.addf %37, %43 : vector<128x128xf32>
      %cst_27 = arith.constant 0.000000e+00 : f32
      %45 = vector.broadcast %cst_27 : f32 to vector<128x128xf32>
      %46 = arith.maximumf %44, %45 : vector<128x128xf32>
      %c0_28 = arith.constant 0 : index
      %c0_29 = arith.constant 0 : index
      %47 = vector.load %arg10[%c0_28, %c0_29] : memref<128x128xf32, #tpu.memory_space<vmem>>, vector<128x128xf32>
      tpu.vector_store %arg10[%c0_28, %c0_29], %46 {strides = array<i32>} : memref<128x128xf32, #tpu.memory_space<vmem>>, vector<128x128xf32>,
    } else {
    }
    return
  }
  func.func @transform_0(%arg0: i32, %arg1: i32) -> (i32, i32) {
    %c0_i32 = arith.constant 0 : i32
    return %arg0, %arg1 : i32, i32
  }
  func.func @transform_1(%arg0: i32, %arg1: i32) -> (i32, i32) {
    %c0_i32 = arith.constant 0 : i32
    %c0_i32_0 = arith.constant 0 : i32
    %c0_i32_1 = arith.constant 0 : i32
    return %c0_i32, %c0_i32_0 : i32, i32
  }
  func.func @transform_2(%arg0: i32, %arg1: i32) -> (i32, i32) {
    %c0_i32 = arith.constant 0 : i32
    %c0_i32_0 = arith.constant 0 : i32
    %c0_i32_1 = arith.constant 0 : i32
    return %c0_i32, %c0_i32_0 : i32, i32
  }
  func.func @transform_3(%arg0: i32, %arg1: i32) -> (i32, i32) {
    %c0_i32 = arith.constant 0 : i32
    %c0_i32_0 = arith.constant 0 : i32
    return %arg0, %c0_i32 : i32, i32
  }
  func.func @transform_4(%arg0: i32, %arg1: i32) -> (i32, i32) {
    %c0_i32 = arith.constant 0 : i32
    %c0_i32_0 = arith.constant 0 : i32
    return %arg0, %c0_i32 : i32, i32
  }
  func.func @transform_5(%arg0: i32, %arg1: i32) -> (i32, i32) {
    %c0_i32 = arith.constant 0 : i32
    %c0_i32_0 = arith.constant 0 : i32
    %c0_i32_1 = arith.constant 0 : i32
    return %c0_i32, %c0_i32_0 : i32, i32
  }
  func.func @transform_6(%arg0: i32, %arg1: i32) -> (i32, i32) {
    %c0_i32 = arith.constant 0 : i32
    %c0_i32_0 = arith.constant 0 : i32
    %c0_i32_1 = arith.constant 0 : i32
    return %c0_i32, %c0_i32_0 : i32, i32
  }
  func.func @transform_7(%arg0: i32, %arg1: i32) -> (i32, i32) {
    %c0_i32 = arith.constant 0 : i32
    %c0_i32_0 = arith.constant 0 : i32
    %c0_i32_1 = arith.constant 0 : i32
    return %c0_i32, %c0_i32_0 : i32, i32
  }
  func.func @transform_8(%arg0: i32, %arg1: i32) -> (i32, i32) {
    %c0_i32 = arith.constant 0 : i32
    %c0_i32_0 = arith.constant 0 : i32
    return %arg0, %c0_i32 : i32, i32
  }
}

</mosaic_0001>

<llo_original>
// kernel: tpu_custom_call.1
$region0: #{tpu_custom_call.1}
  #allocation0 [shape = 'u32[]', space=smem, size = 0x4, offset = 0x4, fixed_abs, tag = 'smem constant byte address 0x4 - core index']
  #allocation1 [shape = 'u32[144,128]{1,0:T(1,128)}', space=vmem, size = 0x12000, scoped, tag = 'internal scratch']
  #allocation2 [shape = 'f32[128,17]{1,0:T(8,128)}', space=vmem, size = 0x10000, scoped, tag = 'scratch operand']
  %s0 = inlined_call_operand.vmem [shape: s8[256,256], index: 0, kind: input, shape index: {}]
  %s1 = inlined_call_operand.vmem [shape: bf16[256,17], index: 1, kind: input, shape index: {}]
  %s2 = inlined_call_operand.vmem [shape: bf16[256,17], index: 2, kind: input, shape index: {}]
  %s3 = inlined_call_operand.vmem [shape: f32[256,16], index: 3, kind: input, shape index: {}]
  %s4 = inlined_call_operand.vmem [shape: f32[256,8], index: 4, kind: input, shape index: {}]
  %s5 = inlined_call_operand.vmem [shape: f32[16,128], index: 5, kind: input, shape index: {}]
  %s6 = inlined_call_operand.vmem [shape: f32[8,128], index: 6, kind: input, shape index: {}]
  %s7 = inlined_call_operand.vmem [shape: f32[1,128], index: 7, kind: input, shape index: {}]
  %s8 = inlined_call_operand.hbm [shape: f32[256,128], index: 8, kind: output, shape index: {}]
  %s9 = sld [smem:[#allocation0]]
  $region111: #{tpu_custom_call.1} parent=0
    _
  %s11 = ssub.s32 1, %s9
  %s12 = scalar_select 0, %s11, %s9
  $region1: #{tpu_custom_call.1} parent=0
    #allocation3 [shape = 'u8[32768]{0}', space=vmem, size = 0x8000, scoped, tag = 'input window, operand 0']
    #allocation4 [shape = 'u8[131072]{0}', space=vmem, size = 0x20000, scoped, tag = 'output window, operand 0']
    #allocation5 [shape = 's32[2]{0}', space=sflag, size = 0x8, scoped, tag = 'scoped memory for tpu_custom_call.1']
    %13 = vsyncpa [#allocation5], 0
    %s14 = scalar_lea.sflag [#allocation5], 1
    %15 = vsyncpa %s14, 0
    loop: start=0, step=1, limit=6
    $region2: #{tpu_custom_call.1} parent=1 // loop_pre_header
      _
    $region3: #{tpu_custom_call.1} parent=1 // loop_header
      %s17 = sphi 0, %s21
      %p18 = scmp.ge.s32.totalorder %s17, 6
      %s24 = sphi 0, %s36
      %s25 = sphi 0, %s32
      %s26 = sphi 0, %s24
      %s27 = sphi 0, %s25
      %s28 = sphi 0, %s26
      %s29 = sphi 0, %s27
      %s41 = sphi 0, %s43
      %s44 = sphi 0, %s41
      %s45 = sphi 0, %s44
      %s61 = sphi 0, %s45
      %s65 = sphi 0, %s65
      %s67 = sphi 0, %s65
      %s68 = sphi 0, %s67
      %s82 = sphi 0, %s68
      %s86 = sphi 0, %s86
      %s88 = sphi 0, %s86
      %s89 = sphi 0, %s88
      %s103 = sphi 0, %s89
      %s109 = sphi 0, %s111
      %s112 = sphi 0, %s109
      %s113 = sphi 0, %s112
      %s129 = sphi 0, %s113
      %s135 = sphi 0, %s137
      %s138 = sphi 0, %s135
      %s139 = sphi 0, %s138
      %s155 = sphi 0, %s139
      %s159 = sphi 0, %s159
      %s161 = sphi 0, %s159
      %s162 = sphi 0, %s161
      %s176 = sphi 0, %s162
      %s180 = sphi 0, %s180
      %s182 = sphi 0, %s180
      %s183 = sphi 0, %s182
      %s197 = sphi 0, %s183
      %s201 = sphi 0, %s201
      %s203 = sphi 0, %s201
      %s204 = sphi 0, %s203
      %s218 = sphi 0, %s204
      %s224 = sphi 0, %s226
      %s227 = sphi 0, %s224
      %s228 = sphi 0, %s227
      %s244 = sphi 0, %s228
    $region4: #{tpu_custom_call.1} parent=1 // loop_header_branch
      %20 = sbr.rel (%p18) target = $region8
    $region5: #{tpu_custom_call.1} parent=1 // loop_body
      %s22 = ssub.s32 %s17, 1
      %s23 = ssub.s32 %s17, 2
      %s30 = sadd.s32 1, %s25
      %p31 = scmp.ge.s32.totalorder %s30, 2
      %s32 = scalar_select %p31, 0, %s30
      %s33 = sadd.s32 1, %s24
      %s34 = scalar_select %p31, %s33, %s24
      %p35 = scmp.ge.s32.totalorder %s34, 2
      %s36 = scalar_select %p35, 0, %s34
      %s37 = ssub.s32 %s24, %s36
      %s38 = ssub.s32 %s25, %s32
      %s39 = sor.u32 %s37, %s38
      %p40 = scmp.eq.s32.totalorder %s39, 0
      %s42 = sadd.s32 %s41, 1
      %s43 = scalar_select %p40, %s41, %s42
      %p46 = pneg %p40
      %p47 = scmp.eq.s32.totalorder %s17, 3
      %p48 = por %p46, %p47
      %p49 = scmp.ne.s32.totalorder %s41, %s44
      %p50 = scmp.eq.s32.totalorder %s17, 0
      %p51 = por %p49, %p50
      %p52 = scmp.ne.s32.totalorder %s41, %s44
      %p53 = scmp.eq.s32.totalorder %s22, 3
      %p54 = por %p52, %p53
      %p55 = scmp.ne.s32.totalorder %s44, %s45
      %p56 = scmp.eq.s32.totalorder %s22, 0
      %p57 = por %p55, %p56
      %p58 = scmp.ne.s32.totalorder %s44, %s45
      %p59 = scmp.eq.s32.totalorder %s23, 3
      %p60 = por %p58, %p59
      %p62 = scmp.ne.s32.totalorder %s45, %s61
      %p63 = scmp.eq.s32.totalorder %s23, 0
      %p64 = por %p62, %p63
      %s66 = sadd.s32 %s65, 1
      %p69 = scmp.eq.s32.totalorder %s17, 3
      %p70 = scmp.ne.s32.totalorder %s65, %s67
      %p71 = scmp.eq.s32.totalorder %s17, 0
      %p72 = por %p70, %p71
      %p73 = scmp.ne.s32.totalorder %s65, %s67
      %p74 = scmp.eq.s32.totalorder %s22, 3
      %p75 = por %p73, %p74
      %p76 = scmp.ne.s32.totalorder %s67, %s68
      %p77 = scmp.eq.s32.totalorder %s22, 0
      %p78 = por %p76, %p77
      %p79 = scmp.ne.s32.totalorder %s67, %s68
      %p80 = scmp.eq.s32.totalorder %s23, 3
      %p81 = por %p79, %p80
      %p83 = scmp.ne.s32.totalorder %s68, %s82
      %p84 = scmp.eq.s32.totalorder %s23, 0
      %p85 = por %p83, %p84
      %s87 = sadd.s32 %s86, 1
      %p90 = scmp.eq.s32.totalorder %s17, 3
      %p91 = scmp.ne.s32.totalorder %s86, %s88
      %p92 = scmp.eq.s32.totalorder %s17, 0
      %p93 = por %p91, %p92
      %p94 = scmp.ne.s32.totalorder %s86, %s88
      %p95 = scmp.eq.s32.totalorder %s22, 3
      %p96 = por %p94, %p95
      %p97 = scmp.ne.s32.totalorder %s88, %s89
      %p98 = scmp.eq.s32.totalorder %s22, 0
      %p99 = por %p97, %p98
      %p100 = scmp.ne.s32.totalorder %s88, %s89
      %p101 = scmp.eq.s32.totalorder %s23, 3
      %p102 = por %p100, %p101
      %p104 = scmp.ne.s32.totalorder %s89, %s103
      %p105 = scmp.eq.s32.totalorder %s23, 0
      %p106 = por %p104, %p105
      %s107 = ssub.s32 %s24, %s36
      %p108 = scmp.eq.s32.totalorder %s107, 0
      %s110 = sadd.s32 %s109, 1
      %s111 = scalar_select %p108, %s109, %s110
      %p114 = pneg %p108
      %p115 = scmp.eq.s32.totalorder %s17, 3
      %p116 = por %p114, %p115
      %p117 = scmp.ne.s32.totalorder %s109, %s112
      %p118 = scmp.eq.s32.totalorder %s17, 0
      %p119 = por %p117, %p118
      %p120 = scmp.ne.s32.totalorder %s109, %s112
      %p121 = scmp.eq.s32.totalorder %s22, 3
      %p122 = por %p120, %p121
      %p123 = scmp.ne.s32.totalorder %s112, %s113
      %p124 = scmp.eq.s32.totalorder %s22, 0
      %p125 = por %p123, %p124
      %p126 = scmp.ne.s32.totalorder %s112, %s113
      %p127 = scmp.eq.s32.totalorder %s23, 3
      %p128 = por %p126, %p127
      %p130 = scmp.ne.s32.totalorder %s113, %s129
      %p131 = scmp.eq.s32.totalorder %s23, 0
      %p132 = por %p130, %p131
      %s133 = ssub.s32 %s24, %s36
      %p134 = scmp.eq.s32.totalorder %s133, 0
      %s136 = sadd.s32 %s135, 1
      %s137 = scalar_select %p134, %s135, %s136
      %p140 = pneg %p134
      %p141 = scmp.eq.s32.totalorder %s17, 3
      %p142 = por %p140, %p141
      %p143 = scmp.ne.s32.totalorder %s135, %s138
      %p144 = scmp.eq.s32.totalorder %s17, 0
      %p145 = por %p143, %p144
      %p146 = scmp.ne.s32.totalorder %s135, %s138
      %p147 = scmp.eq.s32.totalorder %s22, 3
      %p148 = por %p146, %p147
      %p149 = scmp.ne.s32.totalorder %s138, %s139
      %p150 = scmp.eq.s32.totalorder %s22, 0
      %p151 = por %p149, %p150
      %p152 = scmp.ne.s32.totalorder %s138, %s139
      %p153 = scmp.eq.s32.totalorder %s23, 3
      %p154 = por %p152, %p153
      %p156 = scmp.ne.s32.totalorder %s139, %s155
      %p157 = scmp.eq.s32.totalorder %s23, 0
      %p158 = por %p156, %p157
      %s160 = sadd.s32 %s159, 1
      %p163 = scmp.eq.s32.totalorder %s17, 3
      %p164 = scmp.ne.s32.totalorder %s159, %s161
      %p165 = scmp.eq.s32.totalorder %s17, 0
      %p166 = por %p164, %p165
      %p167 = scmp.ne.s32.totalorder %s159, %s161
      %p168 = scmp.eq.s32.totalorder %s22, 3
      %p169 = por %p167, %p168
      %p170 = scmp.ne.s32.totalorder %s161, %s162
      %p171 = scmp.eq.s32.totalorder %s22, 0
      %p172 = por %p170, %p171
      %p173 = scmp.ne.s32.totalorder %s161, %s162
      %p174 = scmp.eq.s32.totalorder %s23, 3
      %p175 = por %p173, %p174
      %p177 = scmp.ne.s32.totalorder %s162, %s176
      %p178 = scmp.eq.s32.totalorder %s23, 0
      %p179 = por %p177, %p178
      %s181 = sadd.s32 %s180, 1
      %p184 = scmp.eq.s32.totalorder %s17, 3
      %p185 = scmp.ne.s32.totalorder %s180, %s182
      %p186 = scmp.eq.s32.totalorder %s17, 0
      %p187 = por %p185, %p186
      %p188 = scmp.ne.s32.totalorder %s180, %s182
      %p189 = scmp.eq.s32.totalorder %s22, 3
      %p190 = por %p188, %p189
      %p191 = scmp.ne.s32.totalorder %s182, %s183
      %p192 = scmp.eq.s32.totalorder %s22, 0
      %p193 = por %p191, %p192
      %p194 = scmp.ne.s32.totalorder %s182, %s183
      %p195 = scmp.eq.s32.totalorder %s23, 3
      %p196 = por %p194, %p195
      %p198 = scmp.ne.s32.totalorder %s183, %s197
      %p199 = scmp.eq.s32.totalorder %s23, 0
      %p200 = por %p198, %p199
      %s202 = sadd.s32 %s201, 1
      %p205 = scmp.eq.s32.totalorder %s17, 3
      %p206 = scmp.ne.s32.totalorder %s201, %s203
      %p207 = scmp.eq.s32.totalorder %s17, 0
      %p208 = por %p206, %p207
      %p209 = scmp.ne.s32.totalorder %s201, %s203
      %p210 = scmp.eq.s32.totalorder %s22, 3
      %p211 = por %p209, %p210
      %p212 = scmp.ne.s32.totalorder %s203, %s204
      %p213 = scmp.eq.s32.totalorder %s22, 0
      %p214 = por %p212, %p213
      %p215 = scmp.ne.s32.totalorder %s203, %s204
      %p216 = scmp.eq.s32.totalorder %s23, 3
      %p217 = por %p215, %p216
      %p219 = scmp.ne.s32.totalorder %s204, %s218
      %p220 = scmp.eq.s32.totalorder %s23, 0
      %p221 = por %p219, %p220
      %s222 = ssub.s32 %s24, %s36
      %p223 = scmp.eq.s32.totalorder %s222, 0
      %s225 = sadd.s32 %s224, 1
      %s226 = scalar_select %p223, %s224, %s225
      %p229 = pneg %p223
      %p230 = scmp.eq.s32.totalorder %s17, 3
      %p231 = por %p229, %p230
      %p232 = scmp.ne.s32.totalorder %s224, %s227
      %p233 = scmp.eq.s32.totalorder %s17, 0
      %p234 = por %p232, %p233
      %p235 = scmp.ne.s32.totalorder %s224, %s227
      %p236 = scmp.eq.s32.totalorder %s22, 3
      %p237 = por %p235, %p236
      %p238 = scmp.ne.s32.totalorder %s227, %s228
      %p239 = scmp.eq.s32.totalorder %s22, 0
      %p240 = por %p238, %p239
      %p241 = scmp.ne.s32.totalorder %s227, %s228
      %p242 = scmp.eq.s32.totalorder %s23, 3
      %p243 = por %p241, %p242
      %p245 = scmp.ne.s32.totalorder %s228, %s244
      %p246 = scmp.eq.s32.totalorder %s23, 0
      %p247 = por %p245, %p246
      %p248 = scmp.le.s32.totalorder 1, %s17
      %p249 = scmp.lt.s32.totalorder %s17, 5
      %p250 = pnand %p248, %p249
      %p251 = pneg %p250
      // Predicated region
      $region9: #{tpu_custom_call.1} parent=5 // pred_check
        _
      $region10: #{tpu_custom_call.1} parent=5 // pred_check_branch
        %253 = sbr.rel (%p250) target = $region12
      $region11: #{tpu_custom_call.1} parent=5 // pred_region
        %s254 = ssub.s32 %s17, 1
        // Predicated region
        $region13: #{tpu_custom_call.1} parent=11 // pred_check
          %p255 = pneg %p78
        $region14: #{tpu_custom_call.1} parent=11 // pred_check_branch
          %257 = sbr.rel (%p255) target = $region16
        $region15: #{tpu_custom_call.1} parent=11 // pred_region
          _
        $region16: #{tpu_custom_call.1} parent=11 // pred_fallthru
          _
        // Predicated region
        $region17: #{tpu_custom_call.1} parent=11 // pred_check
          %p258 = pneg %p99
        $region18: #{tpu_custom_call.1} parent=11 // pred_check_branch
          %260 = sbr.rel (%p258) target = $region20
        $region19: #{tpu_custom_call.1} parent=11 // pred_region
          _
        $region20: #{tpu_custom_call.1} parent=11 // pred_fallthru
          _
        // Predicated region
        $region21: #{tpu_custom_call.1} parent=11 // pred_check
          %p261 = pneg %p172
        $region22: #{tpu_custom_call.1} parent=11 // pred_check_branch
          %263 = sbr.rel (%p261) target = $region24
        $region23: #{tpu_custom_call.1} parent=11 // pred_region
          _
        $region24: #{tpu_custom_call.1} parent=11 // pred_fallthru
          _
        // Predicated region
        $region25: #{tpu_custom_call.1} parent=11 // pred_check
          %p264 = pneg %p193
        $region26: #{tpu_custom_call.1} parent=11 // pred_check_branch
          %266 = sbr.rel (%p264) target = $region28
        $region27: #{tpu_custom_call.1} parent=11 // pred_region
          _
        $region28: #{tpu_custom_call.1} parent=11 // pred_fallthru
          _
        // Predicated region
        $region29: #{tpu_custom_call.1} parent=11 // pred_check
          %p267 = pneg %p214
        $region30: #{tpu_custom_call.1} parent=11 // pred_check_branch
          %269 = sbr.rel (%p267) target = $region32
        $region31: #{tpu_custom_call.1} parent=11 // pred_region
          _
        $region32: #{tpu_custom_call.1} parent=11 // pred_fallthru
          _
      $region12: #{tpu_custom_call.1} parent=5 // pred_fallthru
        _
      %p270 = scmp.lt.s32.totalorder %s17, 4
      // Predicated region
      $region33: #{tpu_custom_call.1} parent=5 // pred_check
        %p271 = pneg %p270
      $region34: #{tpu_custom_call.1} parent=5 // pred_check_branch
        %273 = sbr.rel (%p271) target = $region36
      $region35: #{tpu_custom_call.1} parent=5 // pred_region
        // Predicated region
        $region37: #{tpu_custom_call.1} parent=35 // pred_check
          %p274 = pneg %p51
        $region38: #{tpu_custom_call.1} parent=35 // pred_check_branch
          %276 = sbr.rel (%p274) target = $region40
        $region39: #{tpu_custom_call.1} parent=35 // pred_region
          %s277 = sand.u32 %s41, 1
          %s278 = sand.u32 %s41, 1
          %s279 = smul.addr %s278, 32
          %s280 = scalar_lea.vmem [#allocation3], %s279
          %s281 = smul.u32 4, %s24
          %s282 = smul.addr %s281, 2
          %s283 = sadd.s32 %s25, %s282
          %s284 = smul.addr %s283, 8
          %s285 = scalar_lea.vmem %s0, %s284
          // Predicated region
          $region41: #{tpu_custom_call.1} parent=39 // pred_check
            _
          $region42: #{tpu_custom_call.1} parent=39 // pred_check_branch
            %287 = sbr.rel (0) target = $region44
          $region43: #{tpu_custom_call.1} parent=39 // pred_region
            // Predicated region
            $region45: #{tpu_custom_call.1} parent=43 // pred_check
              _
            $region46: #{tpu_custom_call.1} parent=43 // pred_check_branch
              %289 = sbr.rel (0) target = $region48
            $region47: #{tpu_custom_call.1} parent=43 // pred_region
              // Predicated region
              $region60: #{tpu_custom_call.1} parent=47 // pred_check
                _
              $region61: #{tpu_custom_call.1} parent=47 // pred_check_branch
                %311 = sbr.rel (0) target = $region63
              $region62: #{tpu_custom_call.1} parent=47 // pred_region
                loop: start=0, step=1, limit=1
                $region64: #{tpu_custom_call.1} parent=62 // loop_pre_header
                  _
                $region65: #{tpu_custom_call.1} parent=62 // loop_header
                  %s313 = sphi 0, %s317
                  %p314 = scmp.ge.s32.totalorder %s313, 1
                  %s318 = sphi %s285, %s285
                  %s319 = sphi %s280, %s280
                $region66: #{tpu_custom_call.1} parent=62 // loop_header_branch
                  %316 = sbr.rel (%p314) target = $region70
                $region67: #{tpu_custom_call.1} parent=62 // loop_body
                  %v320 = vld [vmem:[%s318] sm:$0xff]
                  %321 = vst [vmem:[%s319] sm:$0xff] %v320
                  %v322 = vld [vmem:[%s318 + $0x10] sm:$0xff]
                  %323 = vst [vmem:[%s319 + $0x8] sm:$0xff] %v322
                  %v324 = vld [vmem:[%s318 + $0x20] sm:$0xff]
                  %325 = vst [vmem:[%s319 + $0x10] sm:$0xff] %v324
                  %v326 = vld [vmem:[%s318 + $0x30] sm:$0xff]
                  %327 = vst [vmem:[%s319 + $0x18] sm:$0xff] %v326
                $region68: #{tpu_custom_call.1} parent=62 // loop_footer
                  %s317 = sadd.s32 1, %s313
                $region69: #{tpu_custom_call.1} parent=62 // loop_footer_branch
                  %312 = sbr.rel target = $region65
                $region70: #{tpu_custom_call.1} parent=62 // loop_exit
                  _
              $region63: #{tpu_custom_call.1} parent=47 // pred_fallthru
                _
              // Predicated region
              $region71: #{tpu_custom_call.1} parent=47 // pred_check
                _
              $region72: #{tpu_custom_call.1} parent=47 // pred_check_branch
                %329 = sbr.rel target = $region74
              $region73: #{tpu_custom_call.1} parent=47 // pred_region
                _
              $region74: #{tpu_custom_call.1} parent=47 // pred_fallthru
                _
            $region48: #{tpu_custom_call.1} parent=43 // pred_fallthru
              _
            // Predicated region
            $region49: #{tpu_custom_call.1} parent=43 // pred_check
              _
            $region50: #{tpu_custom_call.1} parent=43 // pred_check_branch
              %291 = sbr.rel target = $region52
            $region51: #{tpu_custom_call.1} parent=43 // pred_region
              %s293 = ssub.s32 256, 1
              loop: start=0, step=1, limit=1
              $region53: #{tpu_custom_call.1} parent=51 // loop_pre_header
                _
              $region54: #{tpu_custom_call.1} parent=51 // loop_header
                %s295 = sphi 0, %s299
                %p296 = scmp.ge.s32.totalorder %s295, 1
                %s300 = sphi %s285, %s285
                %s301 = sphi %s280, %s280
              $region55: #{tpu_custom_call.1} parent=51 // loop_header_branch
                %298 = sbr.rel (%p296) target = $region59
              $region56: #{tpu_custom_call.1} parent=51 // loop_body
                %v302 = vld [vmem:[%s300] sm:%s293]
                %303 = vst [vmem:[%s301] sm:%s293] %v302
                %v304 = vld [vmem:[%s300 + $0x10] sm:%s293]
                %305 = vst [vmem:[%s301 + $0x8] sm:%s293] %v304
                %v306 = vld [vmem:[%s300 + $0x20] sm:%s293]
                %307 = vst [vmem:[%s301 + $0x10] sm:%s293] %v306
                %v308 = vld [vmem:[%s300 + $0x30] sm:%s293]
                %309 = vst [vmem:[%s301 + $0x18] sm:%s293] %v308
              $region57: #{tpu_custom_call.1} parent=51 // loop_footer
                %s299 = sadd.s32 1, %s295
              $region58: #{tpu_custom_call.1} parent=51 // loop_footer_branch
                %294 = sbr.rel target = $region54
              $region59: #{tpu_custom_call.1} parent=51 // loop_exit
                _
            $region52: #{tpu_custom_call.1} parent=43 // pred_fallthru
              _
          $region44: #{tpu_custom_call.1} parent=39 // pred_fallthru
            _
          %330 = vnop
        $region40: #{tpu_custom_call.1} parent=35 // pred_fallthru
          _
        // Predicated region
        $region75: #{tpu_custom_call.1} parent=35 // pred_check
          %p331 = pneg %p119
        $region76: #{tpu_custom_call.1} parent=35 // pred_check_branch
          %333 = sbr.rel (%p331) target = $region78
        $region77: #{tpu_custom_call.1} parent=35 // pred_region
          %s334 = smul.u32 16, %s24
          %p335 = scmp.lt.s32.totalorder %s334, 31
          %s336 = scalar_select %p335, %s334, 31
          %s337 = smul.addr %s336, 8
          %s338 = scalar_lea.vmem %s3, %s337
          %s339 = smul.u32 16, %s24
        $region78: #{tpu_custom_call.1} parent=35 // pred_fallthru
          _
        // Predicated region
        $region79: #{tpu_custom_call.1} parent=35 // pred_check
          %p340 = pneg %p145
        $region80: #{tpu_custom_call.1} parent=35 // pred_check_branch
          %342 = sbr.rel (%p340) target = $region82
        $region81: #{tpu_custom_call.1} parent=35 // pred_region
          %s343 = smul.u32 16, %s24
          %p344 = scmp.lt.s32.totalorder %s343, 31
          %s345 = scalar_select %p344, %s343, 31
          %s346 = smul.addr %s345, 8
          %s347 = scalar_lea.vmem %s4, %s346
          %s348 = smul.u32 16, %s24
        $region82: #{tpu_custom_call.1} parent=35 // pred_fallthru
          _
      $region36: #{tpu_custom_call.1} parent=5 // pred_fallthru
        _
      %p349 = scmp.le.s32.totalorder 1, %s17
      %p350 = scmp.lt.s32.totalorder %s17, 5
      %p351 = pnand %p349, %p350
      %p352 = pneg %p351
      // Predicated region
      $region83: #{tpu_custom_call.1} parent=5 // pred_check
        _
      $region84: #{tpu_custom_call.1} parent=5 // pred_check_branch
        %354 = sbr.rel (%p351) target = $region86
      $region85: #{tpu_custom_call.1} parent=5 // pred_region
        %s355 = ssub.s32 %s17, 1
        %s356 = sand.u32 %s44, 1
        %s357 = sand.u32 %s44, 1
        %s358 = smul.addr %s357, 32
        %s359 = scalar_lea.vmem [#allocation3], %s358
        // Predicated region
        $region87: #{tpu_custom_call.1} parent=85 // pred_check
          %p360 = pneg %p57
        $region88: #{tpu_custom_call.1} parent=85 // pred_check_branch
          %362 = sbr.rel (%p360) target = $region90
        $region89: #{tpu_custom_call.1} parent=85 // pred_region
          _
        $region90: #{tpu_custom_call.1} parent=85 // pred_fallthru
          _
        %s363 = sand.u32 %s44, 1
        %s364 = sand.u32 %s44, 1
        %s365 = smul.addr %s364, 32
        %s366 = scalar_lea.vmem [#allocation3], %s365
        %p367 = pneg %p57
        %p368 = pneg %p54
        %p369 = pneg %p78
        %p370 = pneg %p75
        %p371 = pneg %p99
        %p372 = pneg %p96
        %s373 = smul.u32 16, %s26
        %p374 = scmp.lt.s32.totalorder %s373, 31
        %s375 = scalar_select %p374, %s373, 31
        %s376 = smul.addr %s375, 8
        %s377 = scalar_lea.vmem %s3, %s376
        %p378 = pneg %p125
        %p379 = pneg %p122
        %s380 = smul.u32 16, %s26
        %p381 = scmp.lt.s32.totalorder %s380, 31
        %s382 = scalar_select %p381, %s380, 31
        %s383 = smul.addr %s382, 8
        %s384 = scalar_lea.vmem %s4, %s383
        %p385 = pneg %p151
        %p386 = pneg %p148
        %p387 = pneg %p172
        %p388 = pneg %p169
        %p389 = pneg %p193
        %p390 = pneg %p190
        %p391 = pneg %p214
        %p392 = pneg %p211
        %p393 = pneg %p240
        %p394 = pneg %p237
        %s395 = sand.u32 %s227, 1
        %s396 = scalar_lea.sflag [#allocation5], %s395
        %s397 = sand.u32 %s227, 1
        %s398 = smul.addr %s397, 128
        %s399 = scalar_lea.vmem [#allocation4], %s398
        %s400 = smul.u32 4, %s26
        %s401 = smul.u32 16, %s26
        %p402 = scmp.lt.s32.totalorder %s401, 31
        %s403 = scalar_select %p402, %s401, 31
        %s404 = smul.addr %s403, 8
        %s405 = scalar_lea.vmem %s3, %s404
        %s406 = smul.u32 16, %s26
        %s407 = smul.u32 16, %s26
        %p408 = scmp.lt.s32.totalorder %s407, 31
        %s409 = scalar_select %p408, %s407, 31
        %s410 = smul.addr %s409, 8
        %s411 = scalar_lea.vmem %s4, %s410
        %s412 = smul.u32 16, %s26
        %s413 = smul.u32 16, %s26
        %p415 = scmp.eq.s32.totalorder %s27, 0
        // Predicated region
        $region91: #{tpu_custom_call.1} parent=85 // pred_check
          %p416 = pneg %p415
        $region92: #{tpu_custom_call.1} parent=85 // pred_check_branch
          %418 = sbr.rel (%p416) target = $region94
        $region93: #{tpu_custom_call.1} parent=85 // pred_region
          %vm419 = vcmask 138240
          %420 = vst.msk [vmem:[#allocation2] sm:$0xff] %vm419, 0.0
          %421 = vst.msk [vmem:[#allocation2 + $0x8] sm:$0xff] %vm419, 0.0
          %422 = vst.msk [vmem:[#allocation2 + $0x10] sm:$0xff] %vm419, 0.0
          %423 = vst.msk [vmem:[#allocation2 + $0x18] sm:$0xff] %vm419, 0.0
          %424 = vst.msk [vmem:[#allocation2 + $0x20] sm:$0xff] %vm419, 0.0
          %425 = vst.msk [vmem:[#allocation2 + $0x28] sm:$0xff] %vm419, 0.0
          %426 = vst.msk [vmem:[#allocation2 + $0x30] sm:$0xff] %vm419, 0.0
          %427 = vst.msk [vmem:[#allocation2 + $0x38] sm:$0xff] %vm419, 0.0
          %428 = vst.msk [vmem:[#allocation2 + $0x40] sm:$0xff] %vm419, 0.0
          %429 = vst.msk [vmem:[#allocation2 + $0x48] sm:$0xff] %vm419, 0.0
          %430 = vst.msk [vmem:[#allocation2 + $0x50] sm:$0xff] %vm419, 0.0
          %431 = vst.msk [vmem:[#allocation2 + $0x58] sm:$0xff] %vm419, 0.0
          %432 = vst.msk [vmem:[#allocation2 + $0x60] sm:$0xff] %vm419, 0.0
          %433 = vst.msk [vmem:[#allocation2 + $0x68] sm:$0xff] %vm419, 0.0
          %434 = vst.msk [vmem:[#allocation2 + $0x70] sm:$0xff] %vm419, 0.0
          %435 = vst.msk [vmem:[#allocation2 + $0x78] sm:$0xff] %vm419, 0.0
        $region94: #{tpu_custom_call.1} parent=85 // pred_fallthru
          _
        %v436 = vld [vmem:[%s359] sm:$0xff]
        %v437 = vld [vmem:[%s359 + $0x8] sm:$0xff]
        %v438 = vld [vmem:[%s359 + $0x10] sm:$0xff]
        %v439 = vld [vmem:[%s359 + $0x18] sm:$0xff]
        %v440 = vunpack.c.l.s8.bf16 %v436
        %v441 = vunpack.c.h.s8.bf16 %v436
        %v442 = vunpack.c.l.s8.bf16 %v437
        %v443 = vunpack.c.h.s8.bf16 %v437
        %v444 = vunpack.c.l.s8.bf16 %v438
        %v445 = vunpack.c.h.s8.bf16 %v438
        %v446 = vunpack.c.l.s8.bf16 %v439
        %v447 = vunpack.c.h.s8.bf16 %v439
        %s448 = smul.u32 %s27, 128
        %s449 = sshra.s32 %s448, 3
        %s450 = sand.u32 %s448, 7
        %s451 = smul.addr %s449, 4
        %s452 = scalar_lea.vmem %s1, %s451
        %v453 = vld [vmem:[%s452] sm:$0xf]
        %v454 = vld [vmem:[%s452 + $0x4] sm:$0xf]
        %v455 = vld [vmem:[%s452 + $0x8] sm:$0xf]
        %v456 = vld [vmem:[%s452 + $0xc] sm:$0xf]
        %v457 = vld [vmem:[%s452 + $0x10] sm:$0xf]
        %v458 = vld [vmem:[%s452 + $0x14] sm:$0xf]
        %v459 = vld [vmem:[%s452 + $0x18] sm:$0xf]
        %v460 = vld [vmem:[%s452 + $0x1c] sm:$0xf]
        %v461 = vld [vmem:[%s452 + $0x20] sm:$0xf]
        %v462 = vld [vmem:[%s452 + $0x24] sm:$0xf]
        %v463 = vld [vmem:[%s452 + $0x28] sm:$0xf]
        %v464 = vld [vmem:[%s452 + $0x2c] sm:$0xf]
        %v465 = vld [vmem:[%s452 + $0x30] sm:$0xf]
        %v466 = vld [vmem:[%s452 + $0x34] sm:$0xf]
        %v467 = vld [vmem:[%s452 + $0x38] sm:$0xf]
        %v468 = vld [vmem:[%s452 + $0x3c] sm:$0xf]
        %s469 = smul.addr %s449, 4
        %s470 = scalar_lea.vmem %s2, %s469
        %v471 = vld [vmem:[%s470] sm:$0xf]
        %v472 = vld [vmem:[%s470 + $0x4] sm:$0xf]
        %v473 = vld [vmem:[%s470 + $0x8] sm:$0xf]
        %v474 = vld [vmem:[%s470 + $0xc] sm:$0xf]
        %v475 = vld [vmem:[%s470 + $0x10] sm:$0xf]
        %v476 = vld [vmem:[%s470 + $0x14] sm:$0xf]
        %v477 = vld [vmem:[%s470 + $0x18] sm:$0xf]
        %v478 = vld [vmem:[%s470 + $0x1c] sm:$0xf]
        %v479 = vld [vmem:[%s470 + $0x20] sm:$0xf]
        %v480 = vld [vmem:[%s470 + $0x24] sm:$0xf]
        %v481 = vld [vmem:[%s470 + $0x28] sm:$0xf]
        %v482 = vld [vmem:[%s470 + $0x2c] sm:$0xf]
        %v483 = vld [vmem:[%s470 + $0x30] sm:$0xf]
        %v484 = vld [vmem:[%s470 + $0x34] sm:$0xf]
        %v485 = vld [vmem:[%s470 + $0x38] sm:$0xf]
        %v486 = vld [vmem:[%s470 + $0x3c] sm:$0xf]
        %v487 = vld [vmem:[#allocation2] sm:$0xff]
        %v488 = vld [vmem:[#allocation2 + $0x8] sm:$0xff]
        %v489 = vld [vmem:[#allocation2 + $0x10] sm:$0xff]
        %v490 = vld [vmem:[#allocation2 + $0x18] sm:$0xff]
        %v491 = vld [vmem:[#allocation2 + $0x20] sm:$0xff]
        %v492 = vld [vmem:[#allocation2 + $0x28] sm:$0xff]
        %v493 = vld [vmem:[#allocation2 + $0x30] sm:$0xff]
        %v494 = vld [vmem:[#allocation2 + $0x38] sm:$0xff]
        %v495 = vld [vmem:[#allocation2 + $0x40] sm:$0xff]
        %v496 = vld [vmem:[#allocation2 + $0x48] sm:$0xff]
        %v497 = vld [vmem:[#allocation2 + $0x50] sm:$0xff]
        %v498 = vld [vmem:[#allocation2 + $0x58] sm:$0xff]
        %v499 = vld [vmem:[#allocation2 + $0x60] sm:$0xff]
        %v500 = vld [vmem:[#allocation2 + $0x68] sm:$0xff]
        %v501 = vld [vmem:[#allocation2 + $0x70] sm:$0xff]
        %v502 = vld [vmem:[#allocation2 + $0x78] sm:$0xff]
        %v519 = vunpack.c.l.b16 %v471
        %v520 = vunpack.c.l.b16 %v472
        %v521 = vunpack.c.l.b16 %v473
        %v522 = vunpack.c.l.b16 %v474
        %v523 = vunpack.c.l.b16 %v475
        %v524 = vunpack.c.l.b16 %v476
        %v525 = vunpack.c.l.b16 %v477
        %v526 = vunpack.c.l.b16 %v478
        %v527 = vunpack.c.l.b16 %v479
        %v528 = vunpack.c.l.b16 %v480
        %v529 = vunpack.c.l.b16 %v481
        %v530 = vunpack.c.l.b16 %v482
        %v531 = vunpack.c.l.b16 %v483
        %v532 = vunpack.c.l.b16 %v484
        %v533 = vunpack.c.l.b16 %v485
        %v534 = vunpack.c.l.b16 %v486
        %v535 = vpack.c.b16 %v520, %v519
        %v536 = vpack.c.b16 %v522, %v521
        %v537 = vpack.c.b16 %v524, %v523
        %v538 = vpack.c.b16 %v526, %v525
        %v539 = vpack.c.b16 %v528, %v527
        %v540 = vpack.c.b16 %v530, %v529
        %v541 = vpack.c.b16 %v532, %v531
        %v542 = vpack.c.b16 %v534, %v533
        %551 = vmatprep.subr.bf16.mxu0 0
        %552 = vmatpush1.bf16.msra.mxu0 %v542
        %553 = vmatprep.subr.bf16.mxu0 0
        %554 = vmatpush1.bf16.msra.mxu0 %v541
        %555 = vmatprep.subr.bf16.mxu0 0
        %556 = vmatpush1.bf16.msra.mxu0 %v540
        %557 = vmatprep.subr.bf16.mxu0 0
        %558 = vmatpush1.bf16.msra.mxu0 %v539
        %559 = vmatprep.subr.bf16.mxu0 0
        %560 = vmatpush1.bf16.msra.mxu0 %v538
        %561 = vmatprep.subr.bf16.mxu0 0
        %562 = vmatpush1.bf16.msra.mxu0 %v537
        %563 = vmatprep.subr.bf16.mxu0 0
        %564 = vmatpush1.bf16.msra.mxu0 %v536
        %565 = vmatprep.subr.bf16.mxu0 0
        %566 = vmatpush1.bf16.msra.mxu0 %v535
        %567 = vmatprep.subr.bf16.mxu0 0
        %568 = vmatpush2.bf16.msra.mxu0 0
        %569 = vmatprep.subr.bf16.mxu0 0
        %570 = vmatpush2.bf16.msra.mxu0 0
        %571 = vmatprep.subr.bf16.mxu0 0
        %572 = vmatpush2.bf16.msra.mxu0 0
        %573 = vmatprep.subr.bf16.mxu0 0
        %574 = vmatpush2.bf16.msra.mxu0 0
        %575 = vmatprep.subr.bf16.mxu0 0
        %576 = vmatpush2.bf16.msra.mxu0 0
        %577 = vmatprep.subr.bf16.mxu0 0
        %578 = vmatpush2.bf16.msra.mxu0 0
        %579 = vmatprep.subr.bf16.mxu0 0
        %580 = vmatpush2.bf16.msra.mxu0 0
        %581 = vmatprep.subr.bf16.mxu0 0
        %582 = vmatpush2.bf16.msra.mxu0 0
        %583 = vmatprep.mubr.bf16.mxu0 0
        %584 = vmatmul.mubr.bf16.gmra.mxu0 %v440
        %v585 = vpop.f32.mrf.mxu0
        %v586 = vadd.f32 0.0, %v585
        %v587 = vpop.f32.mrf.mxu0
        %v588 = vpop.f32.mrf.mxu0
        %v589 = vadd.f32 0.0, %v588
        %v590 = vpop.f32.mrf.mxu0
        %591 = vmatprep.mubr.bf16.mxu0 0
        %592 = vmatmul.mubr.bf16.gmra.mxu0 %v441
        %v593 = vpop.f32.mrf.mxu0
        %v594 = vadd.f32 0.0, %v593
        %v595 = vpop.f32.mrf.mxu0
        %v596 = vpop.f32.mrf.mxu0
        %v597 = vadd.f32 0.0, %v596
        %v598 = vpop.f32.mrf.mxu0
        %599 = vmatprep.mubr.bf16.mxu0 0
        %600 = vmatmul.mubr.bf16.gmra.mxu0 %v442
        %v601 = vpop.f32.mrf.mxu0
        %v602 = vadd.f32 0.0, %v601
        %v603 = vpop.f32.mrf.mxu0
        %v604 = vpop.f32.mrf.mxu0
        %v605 = vadd.f32 0.0, %v604
        %v606 = vpop.f32.mrf.mxu0
        %607 = vmatprep.mubr.bf16.mxu0 0
        %608 = vmatmul.mubr.bf16.gmra.mxu0 %v443
        %v609 = vpop.f32.mrf.mxu0
        %v610 = vadd.f32 0.0, %v609
        %v611 = vpop.f32.mrf.mxu0
        %v612 = vpop.f32.mrf.mxu0
        %v613 = vadd.f32 0.0, %v612
        %v614 = vpop.f32.mrf.mxu0
        %615 = vmatprep.mubr.bf16.mxu0 0
        %616 = vmatmul.mubr.bf16.gmra.mxu0 %v444
        %v617 = vpop.f32.mrf.mxu0
        %v618 = vadd.f32 0.0, %v617
        %v619 = vpop.f32.mrf.mxu0
        %v620 = vpop.f32.mrf.mxu0
        %v621 = vadd.f32 0.0, %v620
        %v622 = vpop.f32.mrf.mxu0
        %623 = vmatprep.mubr.bf16.mxu0 0
        %624 = vmatmul.mubr.bf16.gmra.mxu0 %v445
        %v625 = vpop.f32.mrf.mxu0
        %v626 = vadd.f32 0.0, %v625
        %v627 = vpop.f32.mrf.mxu0
        %v628 = vpop.f32.mrf.mxu0
        %v629 = vadd.f32 0.0, %v628
        %v630 = vpop.f32.mrf.mxu0
        %631 = vmatprep.mubr.bf16.mxu0 0
        %632 = vmatmul.mubr.bf16.gmra.mxu0 %v446
        %v633 = vpop.f32.mrf.mxu0
        %v634 = vadd.f32 0.0, %v633
        %v635 = vpop.f32.mrf.mxu0
        %v636 = vpop.f32.mrf.mxu0
        %v637 = vadd.f32 0.0, %v636
        %v638 = vpop.f32.mrf.mxu0
        %639 = vmatprep.mubr.bf16.mxu0 0
        %640 = vmatmul.mubr.bf16.gmra.mxu0 %v447
        %v641 = vpop.f32.mrf.mxu0
        %v642 = vadd.f32 0.0, %v641
        %v643 = vpop.f32.mrf.mxu0
        %v644 = vpop.f32.mrf.mxu0
        %v645 = vadd.f32 0.0, %v644
        %v646 = vpop.f32.mrf.mxu0
        %647 = vdwg.mxu0
        %v664 = vunpack.c.l.b16 %v453
        %v665 = vunpack.c.l.b16 %v454
        %v666 = vunpack.c.l.b16 %v455
        %v667 = vunpack.c.l.b16 %v456
        %v668 = vunpack.c.l.b16 %v457
        %v669 = vunpack.c.l.b16 %v458
        %v670 = vunpack.c.l.b16 %v459
        %v671 = vunpack.c.l.b16 %v460
        %v672 = vunpack.c.l.b16 %v461
        %v673 = vunpack.c.l.b16 %v462
        %v674 = vunpack.c.l.b16 %v463
        %v675 = vunpack.c.l.b16 %v464
        %v676 = vunpack.c.l.b16 %v465
        %v677 = vunpack.c.l.b16 %v466
        %v678 = vunpack.c.l.b16 %v467
        %v679 = vunpack.c.l.b16 %v468
        %v680 = vpack.c.b16 %v665, %v664
        %v681 = vpack.c.b16 %v667, %v666
        %v682 = vpack.c.b16 %v669, %v668
        %v683 = vpack.c.b16 %v671, %v670
        %v684 = vpack.c.b16 %v673, %v672
        %v685 = vpack.c.b16 %v675, %v674
        %v686 = vpack.c.b16 %v677, %v676
        %v687 = vpack.c.b16 %v679, %v678
        %696 = vmatprep.subr.bf16.mxu0 0
        %697 = vmatpush1.bf16.msra.mxu0 %v687
        %698 = vmatprep.subr.bf16.mxu0 0
        %699 = vmatpush1.bf16.msra.mxu0 %v686
        %700 = vmatprep.subr.bf16.mxu0 0
        %701 = vmatpush1.bf16.msra.mxu0 %v685
        %702 = vmatprep.subr.bf16.mxu0 0
        %703 = vmatpush1.bf16.msra.mxu0 %v684
        %704 = vmatprep.subr.bf16.mxu0 0
        %705 = vmatpush1.bf16.msra.mxu0 %v683
        %706 = vmatprep.subr.bf16.mxu0 0
        %707 = vmatpush1.bf16.msra.mxu0 %v682
        %708 = vmatprep.subr.bf16.mxu0 0
        %709 = vmatpush1.bf16.msra.mxu0 %v681
        %710 = vmatprep.subr.bf16.mxu0 0
        %711 = vmatpush1.bf16.msra.mxu0 %v680
        %712 = vmatprep.subr.bf16.mxu0 0
        %713 = vmatpush2.bf16.msra.mxu0 0
        %714 = vmatprep.subr.bf16.mxu0 0
        %715 = vmatpush2.bf16.msra.mxu0 0
        %716 = vmatprep.subr.bf16.mxu0 0
        %717 = vmatpush2.bf16.msra.mxu0 0
        %718 = vmatprep.subr.bf16.mxu0 0
        %719 = vmatpush2.bf16.msra.mxu0 0
        %720 = vmatprep.subr.bf16.mxu0 0
        %721 = vmatpush2.bf16.msra.mxu0 0
        %722 = vmatprep.subr.bf16.mxu0 0
        %723 = vmatpush2.bf16.msra.mxu0 0
        %724 = vmatprep.subr.bf16.mxu0 0
        %725 = vmatpush2.bf16.msra.mxu0 0
        %726 = vmatprep.subr.bf16.mxu0 0
        %727 = vmatpush2.bf16.msra.mxu0 0
        %728 = vmatprep.mubr.bf16.mxu0 0
        %729 = vmatmul.mubr.bf16.gmra.mxu0 %v440
        %v730 = vpop.f32.mrf.mxu0
        %v731 = vadd.f32 %v586, %v730
        %v732 = vpop.f32.mrf.mxu0
        %v733 = vpop.f32.mrf.mxu0
        %v734 = vadd.f32 %v589, %v733
        %v735 = vpop.f32.mrf.mxu0
        %736 = vmatprep.mubr.bf16.mxu0 0
        %737 = vmatmul.mubr.bf16.gmra.mxu0 %v441
        %v738 = vpop.f32.mrf.mxu0
        %v739 = vadd.f32 %v594, %v738
        %v740 = vpop.f32.mrf.mxu0
        %v741 = vpop.f32.mrf.mxu0
        %v742 = vadd.f32 %v597, %v741
        %v743 = vpop.f32.mrf.mxu0
        %744 = vmatprep.mubr.bf16.mxu0 0
        %745 = vmatmul.mubr.bf16.gmra.mxu0 %v442
        %v746 = vpop.f32.mrf.mxu0
        %v747 = vadd.f32 %v602, %v746
        %v748 = vpop.f32.mrf.mxu0
        %v749 = vpop.f32.mrf.mxu0
        %v750 = vadd.f32 %v605, %v749
        %v751 = vpop.f32.mrf.mxu0
        %752 = vmatprep.mubr.bf16.mxu0 0
        %753 = vmatmul.mubr.bf16.gmra.mxu0 %v443
        %v754 = vpop.f32.mrf.mxu0
        %v755 = vadd.f32 %v610, %v754
        %v756 = vpop.f32.mrf.mxu0
        %v757 = vpop.f32.mrf.mxu0
        %v758 = vadd.f32 %v613, %v757
        %v759 = vpop.f32.mrf.mxu0
        %760 = vmatprep.mubr.bf16.mxu0 0
        %761 = vmatmul.mubr.bf16.gmra.mxu0 %v444
        %v762 = vpop.f32.mrf.mxu0
        %v763 = vadd.f32 %v618, %v762
        %v764 = vpop.f32.mrf.mxu0
        %v765 = vpop.f32.mrf.mxu0
        %v766 = vadd.f32 %v621, %v765
        %v767 = vpop.f32.mrf.mxu0
        %768 = vmatprep.mubr.bf16.mxu0 0
        %769 = vmatmul.mubr.bf16.gmra.mxu0 %v445
        %v770 = vpop.f32.mrf.mxu0
        %v771 = vadd.f32 %v626, %v770
        %v772 = vpop.f32.mrf.mxu0
        %v773 = vpop.f32.mrf.mxu0
        %v774 = vadd.f32 %v629, %v773
        %v775 = vpop.f32.mrf.mxu0
        %776 = vmatprep.mubr.bf16.mxu0 0
        %777 = vmatmul.mubr.bf16.gmra.mxu0 %v446
        %v778 = vpop.f32.mrf.mxu0
        %v779 = vadd.f32 %v634, %v778
        %v780 = vpop.f32.mrf.mxu0
        %v781 = vpop.f32.mrf.mxu0
        %v782 = vadd.f32 %v637, %v781
        %v783 = vpop.f32.mrf.mxu0
        %784 = vmatprep.mubr.bf16.mxu0 0
        %785 = vmatmul.mubr.bf16.gmra.mxu0 %v447
        %v786 = vpop.f32.mrf.mxu0
        %v787 = vadd.f32 %v642, %v786
        %v788 = vpop.f32.mrf.mxu0
        %v789 = vpop.f32.mrf.mxu0
        %v790 = vadd.f32 %v645, %v789
        %v791 = vpop.f32.mrf.mxu0
        %792 = vdwg.mxu0
        %v793 = vadd.f32 %v487, %v731
        %v794 = vadd.f32 %v488, %v734
        %v795 = vadd.f32 %v489, %v739
        %v796 = vadd.f32 %v490, %v742
        %v797 = vadd.f32 %v491, %v747
        %v798 = vadd.f32 %v492, %v750
        %v799 = vadd.f32 %v493, %v755
        %v800 = vadd.f32 %v494, %v758
        %v801 = vadd.f32 %v495, %v763
        %v802 = vadd.f32 %v496, %v766
        %v803 = vadd.f32 %v497, %v771
        %v804 = vadd.f32 %v498, %v774
        %v805 = vadd.f32 %v499, %v779
        %v806 = vadd.f32 %v500, %v782
        %v807 = vadd.f32 %v501, %v787
        %v808 = vadd.f32 %v502, %v790
        %vm809 = vcmask 138240
        %810 = vst.msk [vmem:[#allocation2] sm:$0xff] %vm809, %v793
        %811 = vst.msk [vmem:[#allocation2 + $0x8] sm:$0xff] %vm809, %v794
        %812 = vst.msk [vmem:[#allocation2 + $0x10] sm:$0xff] %vm809, %v795
        %813 = vst.msk [vmem:[#allocation2 + $0x18] sm:$0xff] %vm809, %v796
        %814 = vst.msk [vmem:[#allocation2 + $0x20] sm:$0xff] %vm809, %v797
        %815 = vst.msk [vmem:[#allocation2 + $0x28] sm:$0xff] %vm809, %v798
        %816 = vst.msk [vmem:[#allocation2 + $0x30] sm:$0xff] %vm809, %v799
        %817 = vst.msk [vmem:[#allocation2 + $0x38] sm:$0xff] %vm809, %v800
        %818 = vst.msk [vmem:[#allocation2 + $0x40] sm:$0xff] %vm809, %v801
        %819 = vst.msk [vmem:[#allocation2 + $0x48] sm:$0xff] %vm809, %v802
        %820 = vst.msk [vmem:[#allocation2 + $0x50] sm:$0xff] %vm809, %v803
        %821 = vst.msk [vmem:[#allocation2 + $0x58] sm:$0xff] %vm809, %v804
        %822 = vst.msk [vmem:[#allocation2 + $0x60] sm:$0xff] %vm809, %v805
        %823 = vst.msk [vmem:[#allocation2 + $0x68] sm:$0xff] %vm809, %v806
        %824 = vst.msk [vmem:[#allocation2 + $0x70] sm:$0xff] %vm809, %v807
        %825 = vst.msk [vmem:[#allocation2 + $0x78] sm:$0xff] %vm809, %v808
        %p826 = scmp.eq.s32.totalorder %s27, 1
        // Predicated region
        $region95: #{tpu_custom_call.1} parent=85 // pred_check
          %p827 = pneg %p826
        $region96: #{tpu_custom_call.1} parent=85 // pred_check_branch
          %829 = sbr.rel (%p827) target = $region98
        $region97: #{tpu_custom_call.1} parent=85 // pred_region
          %v830 = vld [vmem:[#allocation2] sm:$0xff]
          %v831 = vld [vmem:[#allocation2 + $0x8] sm:$0xff]
          %v832 = vld [vmem:[#allocation2 + $0x10] sm:$0xff]
          %v833 = vld [vmem:[#allocation2 + $0x18] sm:$0xff]
          %v834 = vld [vmem:[#allocation2 + $0x20] sm:$0xff]
          %v835 = vld [vmem:[#allocation2 + $0x28] sm:$0xff]
          %v836 = vld [vmem:[#allocation2 + $0x30] sm:$0xff]
          %v837 = vld [vmem:[#allocation2 + $0x38] sm:$0xff]
          %v838 = vld [vmem:[#allocation2 + $0x40] sm:$0xff]
          %v839 = vld [vmem:[#allocation2 + $0x48] sm:$0xff]
          %v840 = vld [vmem:[#allocation2 + $0x50] sm:$0xff]
          %v841 = vld [vmem:[#allocation2 + $0x58] sm:$0xff]
          %v842 = vld [vmem:[#allocation2 + $0x60] sm:$0xff]
          %v843 = vld [vmem:[#allocation2 + $0x68] sm:$0xff]
          %v844 = vld [vmem:[#allocation2 + $0x70] sm:$0xff]
          %v845 = vld [vmem:[#allocation2 + $0x78] sm:$0xff]
          %vm846 = vcmp.gt.f32.partialorder %v830, 0.0
          %vm847 = vcmp.gt.f32.partialorder %v831, 0.0
          %vm848 = vcmp.gt.f32.partialorder %v832, 0.0
          %vm849 = vcmp.gt.f32.partialorder %v833, 0.0
          %vm850 = vcmp.gt.f32.partialorder %v834, 0.0
          %vm851 = vcmp.gt.f32.partialorder %v835, 0.0
          %vm852 = vcmp.gt.f32.partialorder %v836, 0.0
          %vm853 = vcmp.gt.f32.partialorder %v837, 0.0
          %vm854 = vcmp.gt.f32.partialorder %v838, 0.0
          %vm855 = vcmp.gt.f32.partialorder %v839, 0.0
          %vm856 = vcmp.gt.f32.partialorder %v840, 0.0
          %vm857 = vcmp.gt.f32.partialorder %v841, 0.0
          %vm858 = vcmp.gt.f32.partialorder %v842, 0.0
          %vm859 = vcmp.gt.f32.partialorder %v843, 0.0
          %vm860 = vcmp.gt.f32.partialorder %v844, 0.0
          %vm861 = vcmp.gt.f32.partialorder %v845, 0.0
          %v862 = vsel %vm846, 1, 0
          %v863 = vsel %vm847, 1, 0
          %v864 = vsel %vm848, 1, 0
          %v865 = vsel %vm849, 1, 0
          %v866 = vsel %vm850, 1, 0
          %v867 = vsel %vm851, 1, 0
          %v868 = vsel %vm852, 1, 0
          %v869 = vsel %vm853, 1, 0
          %v870 = vsel %vm854, 1, 0
          %v871 = vsel %vm855, 1, 0
          %v872 = vsel %vm856, 1, 0
          %v873 = vsel %vm857, 1, 0
          %v874 = vsel %vm858, 1, 0
          %v875 = vsel %vm859, 1, 0
          %v876 = vsel %vm860, 1, 0
          %v877 = vsel %vm861, 1, 0
          %v878 = vcvt.s32.f32 %v862
          %v879 = vcvt.s32.f32 %v863
          %v880 = vcvt.s32.f32 %v864
          %v881 = vcvt.s32.f32 %v865
          %v882 = vcvt.s32.f32 %v866
          %v883 = vcvt.s32.f32 %v867
          %v884 = vcvt.s32.f32 %v868
          %v885 = vcvt.s32.f32 %v869
          %v886 = vcvt.s32.f32 %v870
          %v887 = vcvt.s32.f32 %v871
          %v888 = vcvt.s32.f32 %v872
          %v889 = vcvt.s32.f32 %v873
          %v890 = vcvt.s32.f32 %v874
          %v891 = vcvt.s32.f32 %v875
          %v892 = vcvt.s32.f32 %v876
          %v893 = vcvt.s32.f32 %v877
          %v894 = vmax.f32 %v830, 1.0
          %v895 = vmax.f32 %v831, 1.0
          %v896 = vmax.f32 %v832, 1.0
          %v897 = vmax.f32 %v833, 1.0
          %v898 = vmax.f32 %v834, 1.0
          %v899 = vmax.f32 %v835, 1.0
          %v900 = vmax.f32 %v836, 1.0
          %v901 = vmax.f32 %v837, 1.0
          %v902 = vmax.f32 %v838, 1.0
          %v903 = vmax.f32 %v839, 1.0
          %v904 = vmax.f32 %v840, 1.0
          %v905 = vmax.f32 %v841, 1.0
          %v906 = vmax.f32 %v842, 1.0
          %v907 = vmax.f32 %v843, 1.0
          %v908 = vmax.f32 %v844, 1.0
          %v909 = vmax.f32 %v845, 1.0
          %v910 = vrcp.pop %v894
          %v911 = vmul.f32 %v878, %v910
          %v912 = vrcp.pop %v895
          %v913 = vmul.f32 %v879, %v912
          %v914 = vrcp.pop %v896
          %v915 = vmul.f32 %v880, %v914
          %v916 = vrcp.pop %v897
          %v917 = vmul.f32 %v881, %v916
          %v918 = vrcp.pop %v898
          %v919 = vmul.f32 %v882, %v918
          %v920 = vrcp.pop %v899
          %v921 = vmul.f32 %v883, %v920
          %v922 = vrcp.pop %v900
          %v923 = vmul.f32 %v884, %v922
          %v924 = vrcp.pop %v901
          %v925 = vmul.f32 %v885, %v924
          %v926 = vrcp.pop %v902
          %v927 = vmul.f32 %v886, %v926
          %v928 = vrcp.pop %v903
          %v929 = vmul.f32 %v887, %v928
          %v930 = vrcp.pop %v904
          %v931 = vmul.f32 %v888, %v930
          %v932 = vrcp.pop %v905
          %v933 = vmul.f32 %v889, %v932
          %v934 = vrcp.pop %v906
          %v935 = vmul.f32 %v890, %v934
          %v936 = vrcp.pop %v907
          %v937 = vmul.f32 %v891, %v936
          %v938 = vrcp.pop %v908
          %v939 = vmul.f32 %v892, %v938
          %v940 = vrcp.pop %v909
          %v941 = vmul.f32 %v893, %v940
          %v942 = vld [vmem:[%s405] sm:$0xff]
          %v943 = vld [vmem:[%s405 + $0x8] sm:$0xff]
          %v944 = vld [vmem:[%s405 + $0x10] sm:$0xff]
          %v945 = vld [vmem:[%s405 + $0x18] sm:$0xff]
          %v946 = vld [vmem:[%s405 + $0x20] sm:$0xff]
          %v947 = vld [vmem:[%s405 + $0x28] sm:$0xff]
          %v948 = vld [vmem:[%s405 + $0x30] sm:$0xff]
          %v949 = vld [vmem:[%s405 + $0x38] sm:$0xff]
          %v950 = vld [vmem:[%s405 + $0x40] sm:$0xff]
          %v951 = vld [vmem:[%s405 + $0x48] sm:$0xff]
          %v952 = vld [vmem:[%s405 + $0x50] sm:$0xff]
          %v953 = vld [vmem:[%s405 + $0x58] sm:$0xff]
          %v954 = vld [vmem:[%s405 + $0x60] sm:$0xff]
          %v955 = vld [vmem:[%s405 + $0x68] sm:$0xff]
          %v956 = vld [vmem:[%s405 + $0x70] sm:$0xff]
          %v957 = vld [vmem:[%s405 + $0x78] sm:$0xff]
          %959 = vset.pattern.permute.xlu0 16
          %960 = vperm.xlu0 %959, %v911
          %v961 = vpop.permute.xlu0 %960
          %964 = vset.pattern.permute.xlu0 16
          %965 = vperm.xlu0 %964, %v913
          %v966 = vpop.permute.xlu0 %965
          %969 = vset.pattern.permute.xlu0 16
          %970 = vperm.xlu0 %969, %v915
          %v971 = vpop.permute.xlu0 %970
          %974 = vset.pattern.permute.xlu0 16
          %975 = vperm.xlu0 %974, %v917
          %v976 = vpop.permute.xlu0 %975
          %979 = vset.pattern.permute.xlu0 16
          %980 = vperm.xlu0 %979, %v919
          %v981 = vpop.permute.xlu0 %980
          %984 = vset.pattern.permute.xlu0 16
          %985 = vperm.xlu0 %984, %v921
          %v986 = vpop.permute.xlu0 %985
          %989 = vset.pattern.permute.xlu0 16
          %990 = vperm.xlu0 %989, %v923
          %v991 = vpop.permute.xlu0 %990
          %994 = vset.pattern.permute.xlu0 16
          %995 = vperm.xlu0 %994, %v925
          %v996 = vpop.permute.xlu0 %995
          %999 = vset.pattern.permute.xlu0 16
          %1000 = vperm.xlu0 %999, %v927
          %v1001 = vpop.permute.xlu0 %1000
          %1004 = vset.pattern.permute.xlu0 16
          %1005 = vperm.xlu0 %1004, %v929
          %v1006 = vpop.permute.xlu0 %1005
          %1009 = vset.pattern.permute.xlu0 16
          %1010 = vperm.xlu0 %1009, %v931
          %v1011 = vpop.permute.xlu0 %1010
          %1014 = vset.pattern.permute.xlu0 16
          %1015 = vperm.xlu0 %1014, %v933
          %v1016 = vpop.permute.xlu0 %1015
          %1019 = vset.pattern.permute.xlu0 16
          %1020 = vperm.xlu0 %1019, %v935
          %v1021 = vpop.permute.xlu0 %1020
          %1024 = vset.pattern.permute.xlu0 16
          %1025 = vperm.xlu0 %1024, %v937
          %v1026 = vpop.permute.xlu0 %1025
          %1029 = vset.pattern.permute.xlu0 16
          %1030 = vperm.xlu0 %1029, %v939
          %v1031 = vpop.permute.xlu0 %1030
          %1034 = vset.pattern.permute.xlu0 16
          %1035 = vperm.xlu0 %1034, %v941
          %v1036 = vpop.permute.xlu0 %1035
          %v1038 = vmul.f32 %v830, %v961
          %v1039 = vmul.f32 %v831, %v966
          %v1040 = vmul.f32 %v832, %v971
          %v1041 = vmul.f32 %v833, %v976
          %v1042 = vmul.f32 %v834, %v981
          %v1043 = vmul.f32 %v835, %v986
          %v1044 = vmul.f32 %v836, %v991
          %v1045 = vmul.f32 %v837, %v996
          %v1046 = vmul.f32 %v838, %v1001
          %v1047 = vmul.f32 %v839, %v1006
          %v1048 = vmul.f32 %v840, %v1011
          %v1049 = vmul.f32 %v841, %v1016
          %v1050 = vmul.f32 %v842, %v1021
          %v1051 = vmul.f32 %v843, %v1026
          %v1052 = vmul.f32 %v844, %v1031
          %v1053 = vmul.f32 %v845, %v1036
          %v1054 = vsub.f32 %v942, %v1038
          %v1055 = vsub.f32 %v943, %v1039
          %v1056 = vsub.f32 %v944, %v1040
          %v1057 = vsub.f32 %v945, %v1041
          %v1058 = vsub.f32 %v946, %v1042
          %v1059 = vsub.f32 %v947, %v1043
          %v1060 = vsub.f32 %v948, %v1044
          %v1061 = vsub.f32 %v949, %v1045
          %v1062 = vsub.f32 %v950, %v1046
          %v1063 = vsub.f32 %v951, %v1047
          %v1064 = vsub.f32 %v952, %v1048
          %v1065 = vsub.f32 %v953, %v1049
          %v1066 = vsub.f32 %v954, %v1050
          %v1067 = vsub.f32 %v955, %v1051
          %v1068 = vsub.f32 %v956, %v1052
          %v1069 = vsub.f32 %v957, %v1053
          %1071 = vset.pattern.permute.xlu0 16
          %1072 = vperm.xlu0 %1071, %v878
          %v1073 = vpop.permute.xlu0 %1072
          %1076 = vset.pattern.permute.xlu0 16
          %1077 = vperm.xlu0 %1076, %v879
          %v1078 = vpop.permute.xlu0 %1077
          %1081 = vset.pattern.permute.xlu0 16
          %1082 = vperm.xlu0 %1081, %v880
          %v1083 = vpop.permute.xlu0 %1082
          %1086 = vset.pattern.permute.xlu0 16
          %1087 = vperm.xlu0 %1086, %v881
          %v1088 = vpop.permute.xlu0 %1087
          %1091 = vset.pattern.permute.xlu0 16
          %1092 = vperm.xlu0 %1091, %v882
          %v1093 = vpop.permute.xlu0 %1092
          %1096 = vset.pattern.permute.xlu0 16
          %1097 = vperm.xlu0 %1096, %v883
          %v1098 = vpop.permute.xlu0 %1097
          %1101 = vset.pattern.permute.xlu0 16
          %1102 = vperm.xlu0 %1101, %v884
          %v1103 = vpop.permute.xlu0 %1102
          %1106 = vset.pattern.permute.xlu0 16
          %1107 = vperm.xlu0 %1106, %v885
          %v1108 = vpop.permute.xlu0 %1107
          %1111 = vset.pattern.permute.xlu0 16
          %1112 = vperm.xlu0 %1111, %v886
          %v1113 = vpop.permute.xlu0 %1112
          %1116 = vset.pattern.permute.xlu0 16
          %1117 = vperm.xlu0 %1116, %v887
          %v1118 = vpop.permute.xlu0 %1117
          %1121 = vset.pattern.permute.xlu0 16
          %1122 = vperm.xlu0 %1121, %v888
          %v1123 = vpop.permute.xlu0 %1122
          %1126 = vset.pattern.permute.xlu0 16
          %1127 = vperm.xlu0 %1126, %v889
          %v1128 = vpop.permute.xlu0 %1127
          %1131 = vset.pattern.permute.xlu0 16
          %1132 = vperm.xlu0 %1131, %v890
          %v1133 = vpop.permute.xlu0 %1132
          %1136 = vset.pattern.permute.xlu0 16
          %1137 = vperm.xlu0 %1136, %v891
          %v1138 = vpop.permute.xlu0 %1137
          %1141 = vset.pattern.permute.xlu0 16
          %1142 = vperm.xlu0 %1141, %v892
          %v1143 = vpop.permute.xlu0 %1142
          %1146 = vset.pattern.permute.xlu0 16
          %1147 = vperm.xlu0 %1146, %v893
          %v1148 = vpop.permute.xlu0 %1147
          %v1150 = vmul.f32 %v1054, %v1073
          %v1151 = vmul.f32 %v1055, %v1078
          %v1152 = vmul.f32 %v1056, %v1083
          %v1153 = vmul.f32 %v1057, %v1088
          %v1154 = vmul.f32 %v1058, %v1093
          %v1155 = vmul.f32 %v1059, %v1098
          %v1156 = vmul.f32 %v1060, %v1103
          %v1157 = vmul.f32 %v1061, %v1108
          %v1158 = vmul.f32 %v1062, %v1113
          %v1159 = vmul.f32 %v1063, %v1118
          %v1160 = vmul.f32 %v1064, %v1123
          %v1161 = vmul.f32 %v1065, %v1128
          %v1162 = vmul.f32 %v1066, %v1133
          %v1163 = vmul.f32 %v1067, %v1138
          %v1164 = vmul.f32 %v1068, %v1143
          %v1165 = vmul.f32 %v1069, %v1148
          %v1166 = vld [vmem:[%s5] sm:$0xff]
          %v1167 = vld [vmem:[%s5 + $0x8] sm:$0xff]
          %v1168 = vld [vmem:[%s411] sm:$0xff]
          %v1169 = vld [vmem:[%s411 + $0x8] sm:$0xff]
          %v1170 = vld [vmem:[%s411 + $0x10] sm:$0xff]
          %v1171 = vld [vmem:[%s411 + $0x18] sm:$0xff]
          %v1172 = vld [vmem:[%s411 + $0x20] sm:$0xff]
          %v1173 = vld [vmem:[%s411 + $0x28] sm:$0xff]
          %v1174 = vld [vmem:[%s411 + $0x30] sm:$0xff]
          %v1175 = vld [vmem:[%s411 + $0x38] sm:$0xff]
          %v1176 = vld [vmem:[%s411 + $0x40] sm:$0xff]
          %v1177 = vld [vmem:[%s411 + $0x48] sm:$0xff]
          %v1178 = vld [vmem:[%s411 + $0x50] sm:$0xff]
          %v1179 = vld [vmem:[%s411 + $0x58] sm:$0xff]
          %v1180 = vld [vmem:[%s411 + $0x60] sm:$0xff]
          %v1181 = vld [vmem:[%s411 + $0x68] sm:$0xff]
          %v1182 = vld [vmem:[%s411 + $0x70] sm:$0xff]
          %v1183 = vld [vmem:[%s411 + $0x78] sm:$0xff]
          %v1184 = vld [vmem:[%s6] sm:$0xff]
          %v1185 = vld [vmem:[%s7] sm:$0x1]
          %v1187 = vlaneseq
          %v1188 = vshrl.u32 %v1187, 7
          %v1189 = vsub.s32 0, %v1188
          %v1190 = vrot.slane %v1185, %v1189
          %vm1192 = vcmask 64512
          %v1194 = vsel %vm1192, %v1168, 0
          %v1197 = vsel %vm1192, %v1169, 0
          %v1200 = vsel %vm1192, %v1170, 0
          %v1203 = vsel %vm1192, %v1171, 0
          %v1206 = vsel %vm1192, %v1172, 0
          %v1209 = vsel %vm1192, %v1173, 0
          %v1212 = vsel %vm1192, %v1174, 0
          %v1215 = vsel %vm1192, %v1175, 0
          %v1218 = vsel %vm1192, %v1176, 0
          %v1221 = vsel %vm1192, %v1177, 0
          %v1224 = vsel %vm1192, %v1178, 0
          %v1227 = vsel %vm1192, %v1179, 0
          %v1230 = vsel %vm1192, %v1180, 0
          %v1233 = vsel %vm1192, %v1181, 0
          %v1236 = vsel %vm1192, %v1182, 0
          %v1239 = vsel %vm1192, %v1183, 0
          %1241 = vmatprep.subr.mxu0 0.0
          %1242 = vmatpush1.msra.mxu0 0.0
          %1243 = vmatprep.subr.mxu0 0.0
          %1244 = vmatpush1.msra.mxu0 0.0
          %1245 = vmatprep.subr.mxu0 0.0
          %1246 = vmatpush1.msra.mxu0 0.0
          %1247 = vmatprep.subr.mxu0 0.0
          %1248 = vmatpush1.msra.mxu0 0.0
          %1249 = vmatprep.subr.mxu0 0.0
          %1250 = vmatpush1.msra.mxu0 0.0
          %1251 = vmatprep.subr.mxu0 0.0
          %1252 = vmatpush1.msra.mxu0 0.0
          %1253 = vmatprep.subr.mxu0 0.0
          %1254 = vmatpush1.msra.mxu0 0.0
          %1255 = vmatprep.subr.mxu0 0.0
          %1256 = vmatpush1.msra.mxu0 0.0
          %1257 = vmatprep.subr.mxu0 0.0
          %1258 = vmatpush1.msra.mxu0 0.0
          %1259 = vmatprep.subr.mxu0 0.0
          %1260 = vmatpush1.msra.mxu0 0.0
          %1261 = vmatprep.subr.mxu0 0.0
          %1262 = vmatpush1.msra.mxu0 0.0
          %1263 = vmatprep.subr.mxu0 0.0
          %1264 = vmatpush1.msra.mxu0 0.0
          %1265 = vmatprep.subr.mxu0 0.0
          %1266 = vmatpush1.msra.mxu0 0.0
          %1267 = vmatprep.subr.mxu0 0.0
          %1268 = vmatpush1.msra.mxu0 0.0
          %1269 = vmatprep.subr.mxu0 0.0
          %1270 = vmatpush1.msra.mxu0 0.0
          %1271 = vmatprep.subr.mxu0 0.0
          %1272 = vmatpush1.msra.mxu0 %v1184
          %1273 = vmatprep.subr.mxu0 0.0
          %1274 = vmatpush2.msra.mxu0 0.0
          %1275 = vmatprep.subr.mxu0 0.0
          %1276 = vmatpush2.msra.mxu0 0.0
          %1277 = vmatprep.subr.mxu0 0.0
          %1278 = vmatpush2.msra.mxu0 0.0
          %1279 = vmatprep.subr.mxu0 0.0
          %1280 = vmatpush2.msra.mxu0 0.0
          %1281 = vmatprep.subr.mxu0 0.0
          %1282 = vmatpush2.msra.mxu0 0.0
          %1283 = vmatprep.subr.mxu0 0.0
          %1284 = vmatpush2.msra.mxu0 0.0
          %1285 = vmatprep.subr.mxu0 0.0
          %1286 = vmatpush2.msra.mxu0 0.0
          %1287 = vmatprep.subr.mxu0 0.0
          %1288 = vmatpush2.msra.mxu0 0.0
          %1289 = vmatprep.subr.mxu0 0.0
          %1290 = vmatpush2.msra.mxu0 0.0
          %1291 = vmatprep.subr.mxu0 0.0
          %1292 = vmatpush2.msra.mxu0 0.0
          %1293 = vmatprep.subr.mxu0 0.0
          %1294 = vmatpush2.msra.mxu0 0.0
          %1295 = vmatprep.subr.mxu0 0.0
          %1296 = vmatpush2.msra.mxu0 0.0
          %1297 = vmatprep.subr.mxu0 0.0
          %1298 = vmatpush2.msra.mxu0 0.0
          %1299 = vmatprep.subr.mxu0 0.0
          %1300 = vmatpush2.msra.mxu0 0.0
          %1301 = vmatprep.subr.mxu0 0.0
          %1302 = vmatpush2.msra.mxu0 0.0
          %1303 = vmatprep.subr.mxu0 0.0
          %1304 = vmatpush2.msra.mxu0 0.0
          %1305 = vmatprep.mubr.f32.mxu0 0.0
          %1306 = vmatmul.mubr.f32.gmra.mxu0 %v1194
          %v1307 = vpop.f32.mrf.mxu0
          %v1308 = vadd.f32 %v1190, %v1307
          %v1309 = vpop.f32.mrf.mxu0
          %1310 = vmatprep.mubr.f32.mxu0 0.0
          %1311 = vmatmul.mubr.f32.gmra.mxu0 %v1197
          %v1312 = vpop.f32.mrf.mxu0
          %v1313 = vadd.f32 %v1190, %v1312
          %v1314 = vpop.f32.mrf.mxu0
          %1315 = vmatprep.mubr.f32.mxu0 0.0
          %1316 = vmatmul.mubr.f32.gmra.mxu0 %v1200
          %v1317 = vpop.f32.mrf.mxu0
          %v1318 = vadd.f32 %v1190, %v1317
          %v1319 = vpop.f32.mrf.mxu0
          %1320 = vmatprep.mubr.f32.mxu0 0.0
          %1321 = vmatmul.mubr.f32.gmra.mxu0 %v1203
          %v1322 = vpop.f32.mrf.mxu0
          %v1323 = vadd.f32 %v1190, %v1322
          %v1324 = vpop.f32.mrf.mxu0
          %1325 = vmatprep.mubr.f32.mxu0 0.0
          %1326 = vmatmul.mubr.f32.gmra.mxu0 %v1206
          %v1327 = vpop.f32.mrf.mxu0
          %v1328 = vadd.f32 %v1190, %v1327
          %v1329 = vpop.f32.mrf.mxu0
          %1330 = vmatprep.mubr.f32.mxu0 0.0
          %1331 = vmatmul.mubr.f32.gmra.mxu0 %v1209
          %v1332 = vpop.f32.mrf.mxu0
          %v1333 = vadd.f32 %v1190, %v1332
          %v1334 = vpop.f32.mrf.mxu0
          %1335 = vmatprep.mubr.f32.mxu0 0.0
          %1336 = vmatmul.mubr.f32.gmra.mxu0 %v1212
          %v1337 = vpop.f32.mrf.mxu0
          %v1338 = vadd.f32 %v1190, %v1337
          %v1339 = vpop.f32.mrf.mxu0
          %1340 = vmatprep.mubr.f32.mxu0 0.0
          %1341 = vmatmul.mubr.f32.gmra.mxu0 %v1215
          %v1342 = vpop.f32.mrf.mxu0
          %v1343 = vadd.f32 %v1190, %v1342
          %v1344 = vpop.f32.mrf.mxu0
          %1345 = vmatprep.mubr.f32.mxu0 0.0
          %1346 = vmatmul.mubr.f32.gmra.mxu0 %v1218
          %v1347 = vpop.f32.mrf.mxu0
          %v1348 = vadd.f32 %v1190, %v1347
          %v1349 = vpop.f32.mrf.mxu0
          %1350 = vmatprep.mubr.f32.mxu0 0.0
          %1351 = vmatmul.mubr.f32.gmra.mxu0 %v1221
          %v1352 = vpop.f32.mrf.mxu0
          %v1353 = vadd.f32 %v1190, %v1352
          %v1354 = vpop.f32.mrf.mxu0
          %1355 = vmatprep.mubr.f32.mxu0 0.0
          %1356 = vmatmul.mubr.f32.gmra.mxu0 %v1224
          %v1357 = vpop.f32.mrf.mxu0
          %v1358 = vadd.f32 %v1190, %v1357
          %v1359 = vpop.f32.mrf.mxu0
          %1360 = vmatprep.mubr.f32.mxu0 0.0
          %1361 = vmatmul.mubr.f32.gmra.mxu0 %v1227
          %v1362 = vpop.f32.mrf.mxu0
          %v1363 = vadd.f32 %v1190, %v1362
          %v1364 = vpop.f32.mrf.mxu0
          %1365 = vmatprep.mubr.f32.mxu0 0.0
          %1366 = vmatmul.mubr.f32.gmra.mxu0 %v1230
          %v1367 = vpop.f32.mrf.mxu0
          %v1368 = vadd.f32 %v1190, %v1367
          %v1369 = vpop.f32.mrf.mxu0
          %1370 = vmatprep.mubr.f32.mxu0 0.0
          %1371 = vmatmul.mubr.f32.gmra.mxu0 %v1233
          %v1372 = vpop.f32.mrf.mxu0
          %v1373 = vadd.f32 %v1190, %v1372
          %v1374 = vpop.f32.mrf.mxu0
          %1375 = vmatprep.mubr.f32.mxu0 0.0
          %1376 = vmatmul.mubr.f32.gmra.mxu0 %v1236
          %v1377 = vpop.f32.mrf.mxu0
          %v1378 = vadd.f32 %v1190, %v1377
          %v1379 = vpop.f32.mrf.mxu0
          %1380 = vmatprep.mubr.f32.mxu0 0.0
          %1381 = vmatmul.mubr.f32.gmra.mxu0 %v1239
          %v1382 = vpop.f32.mrf.mxu0
          %v1383 = vadd.f32 %v1190, %v1382
          %v1384 = vpop.f32.mrf.mxu0
          %1385 = vdwg.mxu0
          %vm1386 = vcmask 130048
          %v1388 = vsel %vm1386, %v1150, 0
          %v1391 = vsel %vm1386, %v1151, 0
          %v1394 = vsel %vm1386, %v1152, 0
          %v1397 = vsel %vm1386, %v1153, 0
          %v1400 = vsel %vm1386, %v1154, 0
          %v1403 = vsel %vm1386, %v1155, 0
          %v1406 = vsel %vm1386, %v1156, 0
          %v1409 = vsel %vm1386, %v1157, 0
          %v1412 = vsel %vm1386, %v1158, 0
          %v1415 = vsel %vm1386, %v1159, 0
          %v1418 = vsel %vm1386, %v1160, 0
          %v1421 = vsel %vm1386, %v1161, 0
          %v1424 = vsel %vm1386, %v1162, 0
          %v1427 = vsel %vm1386, %v1163, 0
          %v1430 = vsel %vm1386, %v1164, 0
          %v1433 = vsel %vm1386, %v1165, 0
          %1435 = vmatprep.subr.mxu0 0.0
          %1436 = vmatpush1.msra.mxu0 0.0
          %1437 = vmatprep.subr.mxu0 0.0
          %1438 = vmatpush1.msra.mxu0 0.0
          %1439 = vmatprep.subr.mxu0 0.0
          %1440 = vmatpush1.msra.mxu0 0.0
          %1441 = vmatprep.subr.mxu0 0.0
          %1442 = vmatpush1.msra.mxu0 0.0
          %1443 = vmatprep.subr.mxu0 0.0
          %1444 = vmatpush1.msra.mxu0 0.0
          %1445 = vmatprep.subr.mxu0 0.0
          %1446 = vmatpush1.msra.mxu0 0.0
          %1447 = vmatprep.subr.mxu0 0.0
          %1448 = vmatpush1.msra.mxu0 0.0
          %1449 = vmatprep.subr.mxu0 0.0
          %1450 = vmatpush1.msra.mxu0 0.0
          %1451 = vmatprep.subr.mxu0 0.0
          %1452 = vmatpush1.msra.mxu0 0.0
          %1453 = vmatprep.subr.mxu0 0.0
          %1454 = vmatpush1.msra.mxu0 0.0
          %1455 = vmatprep.subr.mxu0 0.0
          %1456 = vmatpush1.msra.mxu0 0.0
          %1457 = vmatprep.subr.mxu0 0.0
          %1458 = vmatpush1.msra.mxu0 0.0
          %1459 = vmatprep.subr.mxu0 0.0
          %1460 = vmatpush1.msra.mxu0 0.0
          %1461 = vmatprep.subr.mxu0 0.0
          %1462 = vmatpush1.msra.mxu0 0.0
          %1463 = vmatprep.subr.mxu0 0.0
          %1464 = vmatpush1.msra.mxu0 %v1167
          %1465 = vmatprep.subr.mxu0 0.0
          %1466 = vmatpush1.msra.mxu0 %v1166
          %1467 = vmatprep.subr.mxu0 0.0
          %1468 = vmatpush2.msra.mxu0 0.0
          %1469 = vmatprep.subr.mxu0 0.0
          %1470 = vmatpush2.msra.mxu0 0.0
          %1471 = vmatprep.subr.mxu0 0.0
          %1472 = vmatpush2.msra.mxu0 0.0
          %1473 = vmatprep.subr.mxu0 0.0
          %1474 = vmatpush2.msra.mxu0 0.0
          %1475 = vmatprep.subr.mxu0 0.0
          %1476 = vmatpush2.msra.mxu0 0.0
          %1477 = vmatprep.subr.mxu0 0.0
          %1478 = vmatpush2.msra.mxu0 0.0
          %1479 = vmatprep.subr.mxu0 0.0
          %1480 = vmatpush2.msra.mxu0 0.0
          %1481 = vmatprep.subr.mxu0 0.0
          %1482 = vmatpush2.msra.mxu0 0.0
          %1483 = vmatprep.subr.mxu0 0.0
          %1484 = vmatpush2.msra.mxu0 0.0
          %1485 = vmatprep.subr.mxu0 0.0
          %1486 = vmatpush2.msra.mxu0 0.0
          %1487 = vmatprep.subr.mxu0 0.0
          %1488 = vmatpush2.msra.mxu0 0.0
          %1489 = vmatprep.subr.mxu0 0.0
          %1490 = vmatpush2.msra.mxu0 0.0
          %1491 = vmatprep.subr.mxu0 0.0
          %1492 = vmatpush2.msra.mxu0 0.0
          %1493 = vmatprep.subr.mxu0 0.0
          %1494 = vmatpush2.msra.mxu0 0.0
          %1495 = vmatprep.subr.mxu0 0.0
          %1496 = vmatpush2.msra.mxu0 0.0
          %1497 = vmatprep.subr.mxu0 0.0
          %1498 = vmatpush2.msra.mxu0 0.0
          %1499 = vmatprep.mubr.f32.mxu0 0.0
          %1500 = vmatmul.mubr.f32.gmra.mxu0 %v1388
          %v1501 = vpop.f32.mrf.mxu0
          %v1502 = vadd.f32 %v1308, %v1501
          %v1503 = vpop.f32.mrf.mxu0
          %1504 = vmatprep.mubr.f32.mxu0 0.0
          %1505 = vmatmul.mubr.f32.gmra.mxu0 %v1391
          %v1506 = vpop.f32.mrf.mxu0
          %v1507 = vadd.f32 %v1313, %v1506
          %v1508 = vpop.f32.mrf.mxu0
          %1509 = vmatprep.mubr.f32.mxu0 0.0
          %1510 = vmatmul.mubr.f32.gmra.mxu0 %v1394
          %v1511 = vpop.f32.mrf.mxu0
          %v1512 = vadd.f32 %v1318, %v1511
          %v1513 = vpop.f32.mrf.mxu0
          %1514 = vmatprep.mubr.f32.mxu0 0.0
          %1515 = vmatmul.mubr.f32.gmra.mxu0 %v1397
          %v1516 = vpop.f32.mrf.mxu0
          %v1517 = vadd.f32 %v1323, %v1516
          %v1518 = vpop.f32.mrf.mxu0
          %1519 = vmatprep.mubr.f32.mxu0 0.0
          %1520 = vmatmul.mubr.f32.gmra.mxu0 %v1400
          %v1521 = vpop.f32.mrf.mxu0
          %v1522 = vadd.f32 %v1328, %v1521
          %v1523 = vpop.f32.mrf.mxu0
          %1524 = vmatprep.mubr.f32.mxu0 0.0
          %1525 = vmatmul.mubr.f32.gmra.mxu0 %v1403
          %v1526 = vpop.f32.mrf.mxu0
          %v1527 = vadd.f32 %v1333, %v1526
          %v1528 = vpop.f32.mrf.mxu0
          %1529 = vmatprep.mubr.f32.mxu0 0.0
          %1530 = vmatmul.mubr.f32.gmra.mxu0 %v1406
          %v1531 = vpop.f32.mrf.mxu0
          %v1532 = vadd.f32 %v1338, %v1531
          %v1533 = vpop.f32.mrf.mxu0
          %1534 = vmatprep.mubr.f32.mxu0 0.0
          %1535 = vmatmul.mubr.f32.gmra.mxu0 %v1409
          %v1536 = vpop.f32.mrf.mxu0
          %v1537 = vadd.f32 %v1343, %v1536
          %v1538 = vpop.f32.mrf.mxu0
          %1539 = vmatprep.mubr.f32.mxu0 0.0
          %1540 = vmatmul.mubr.f32.gmra.mxu0 %v1412
          %v1541 = vpop.f32.mrf.mxu0
          %v1542 = vadd.f32 %v1348, %v1541
          %v1543 = vpop.f32.mrf.mxu0
          %1544 = vmatprep.mubr.f32.mxu0 0.0
          %1545 = vmatmul.mubr.f32.gmra.mxu0 %v1415
          %v1546 = vpop.f32.mrf.mxu0
          %v1547 = vadd.f32 %v1353, %v1546
          %v1548 = vpop.f32.mrf.mxu0
          %1549 = vmatprep.mubr.f32.mxu0 0.0
          %1550 = vmatmul.mubr.f32.gmra.mxu0 %v1418
          %v1551 = vpop.f32.mrf.mxu0
          %v1552 = vadd.f32 %v1358, %v1551
          %v1553 = vpop.f32.mrf.mxu0
          %1554 = vmatprep.mubr.f32.mxu0 0.0
          %1555 = vmatmul.mubr.f32.gmra.mxu0 %v1421
          %v1556 = vpop.f32.mrf.mxu0
          %v1557 = vadd.f32 %v1363, %v1556
          %v1558 = vpop.f32.mrf.mxu0
          %1559 = vmatprep.mubr.f32.mxu0 0.0
          %1560 = vmatmul.mubr.f32.gmra.mxu0 %v1424
          %v1561 = vpop.f32.mrf.mxu0
          %v1562 = vadd.f32 %v1368, %v1561
          %v1563 = vpop.f32.mrf.mxu0
          %1564 = vmatprep.mubr.f32.mxu0 0.0
          %1565 = vmatmul.mubr.f32.gmra.mxu0 %v1427
          %v1566 = vpop.f32.mrf.mxu0
          %v1567 = vadd.f32 %v1373, %v1566
          %v1568 = vpop.f32.mrf.mxu0
          %1569 = vmatprep.mubr.f32.mxu0 0.0
          %1570 = vmatmul.mubr.f32.gmra.mxu0 %v1430
          %v1571 = vpop.f32.mrf.mxu0
          %v1572 = vadd.f32 %v1378, %v1571
          %v1573 = vpop.f32.mrf.mxu0
          %1574 = vmatprep.mubr.f32.mxu0 0.0
          %1575 = vmatmul.mubr.f32.gmra.mxu0 %v1433
          %v1576 = vpop.f32.mrf.mxu0
          %v1577 = vadd.f32 %v1383, %v1576
          %v1578 = vpop.f32.mrf.mxu0
          %1579 = vdwg.mxu0
          %v1580 = vmax.f32 %v1502, 0.0
          %v1581 = vmax.f32 %v1507, 0.0
          %v1582 = vmax.f32 %v1512, 0.0
          %v1583 = vmax.f32 %v1517, 0.0
          %v1584 = vmax.f32 %v1522, 0.0
          %v1585 = vmax.f32 %v1527, 0.0
          %v1586 = vmax.f32 %v1532, 0.0
          %v1587 = vmax.f32 %v1537, 0.0
          %v1588 = vmax.f32 %v1542, 0.0
          %v1589 = vmax.f32 %v1547, 0.0
          %v1590 = vmax.f32 %v1552, 0.0
          %v1591 = vmax.f32 %v1557, 0.0
          %v1592 = vmax.f32 %v1562, 0.0
          %v1593 = vmax.f32 %v1567, 0.0
          %v1594 = vmax.f32 %v1572, 0.0
          %v1595 = vmax.f32 %v1577, 0.0
          %1596 = vst [vmem:[%s399] sm:$0xff] %v1580
          %1597 = vst [vmem:[%s399 + $0x8] sm:$0xff] %v1581
          %1598 = vst [vmem:[%s399 + $0x10] sm:$0xff] %v1582
          %1599 = vst [vmem:[%s399 + $0x18] sm:$0xff] %v1583
          %1600 = vst [vmem:[%s399 + $0x20] sm:$0xff] %v1584
          %1601 = vst [vmem:[%s399 + $0x28] sm:$0xff] %v1585
          %1602 = vst [vmem:[%s399 + $0x30] sm:$0xff] %v1586
          %1603 = vst [vmem:[%s399 + $0x38] sm:$0xff] %v1587
          %1604 = vst [vmem:[%s399 + $0x40] sm:$0xff] %v1588
          %1605 = vst [vmem:[%s399 + $0x48] sm:$0xff] %v1589
          %1606 = vst [vmem:[%s399 + $0x50] sm:$0xff] %v1590
          %1607 = vst [vmem:[%s399 + $0x58] sm:$0xff] %v1591
          %1608 = vst [vmem:[%s399 + $0x60] sm:$0xff] %v1592
          %1609 = vst [vmem:[%s399 + $0x68] sm:$0xff] %v1593
          %1610 = vst [vmem:[%s399 + $0x70] sm:$0xff] %v1594
          %1611 = vst [vmem:[%s399 + $0x78] sm:$0xff] %v1595
        $region98: #{tpu_custom_call.1} parent=85 // pred_fallthru
          _
        %s1612 = sand.u32 %s227, 1
        %s1613 = scalar_lea.sflag [#allocation5], %s1612
        %s1614 = sand.u32 %s227, 1
        %s1615 = smul.addr %s1614, 128
        %s1616 = scalar_lea.vmem [#allocation4], %s1615
        // Predicated region
        $region99: #{tpu_custom_call.1} parent=85 // pred_check
          %p1617 = pneg %p237
        $region100: #{tpu_custom_call.1} parent=85 // pred_check_branch
          %1619 = sbr.rel (%p1617) target = $region102
        $region101: #{tpu_custom_call.1} parent=85 // pred_region
          %s1620 = smul.u32 16, %s26
          %s1622 = ssub.s32 2048, 2048
          %1623 = vsyncadd %s1613, %s1622
          %s1624 = smul.addr %s1620, 128
          %s1625 = scalar_lea.hbm %s8, %s1624
          %s1626 = sshll.u32 %s1616, 4
          %s1627 = int_to_ptr.vmem [resolvable:$true] %s1626
          %1632 = dma.vmem_to_hbm [thread:$0]  %s1627, 2048, %s1625, %s1613, 128, 128, 8
        $region102: #{tpu_custom_call.1} parent=85 // pred_fallthru
          _
      $region86: #{tpu_custom_call.1} parent=5 // pred_fallthru
        _
      %p1633 = scmp.le.s32.totalorder 2, %s17
      // Predicated region
      $region103: #{tpu_custom_call.1} parent=5 // pred_check
        %p1634 = pneg %p1633
      $region104: #{tpu_custom_call.1} parent=5 // pred_check_branch
        %1636 = sbr.rel (%p1634) target = $region106
      $region105: #{tpu_custom_call.1} parent=5 // pred_region
        %s1637 = ssub.s32 %s17, 2
        // Predicated region
        $region107: #{tpu_custom_call.1} parent=105 // pred_check
          %p1638 = pneg %p243
        $region108: #{tpu_custom_call.1} parent=105 // pred_check_branch
          %1640 = sbr.rel (%p1638) target = $region110
        $region109: #{tpu_custom_call.1} parent=105 // pred_region
          %s1641 = sand.u32 %s228, 1
          %s1642 = scalar_lea.sflag [#allocation5], %s1641
          %s1643 = sand.u32 %s228, 1
          %s1644 = smul.addr %s1643, 128
          %s1645 = scalar_lea.vmem [#allocation4], %s1644
          %1646 = dma.done %s1642, 2048
        $region110: #{tpu_custom_call.1} parent=105 // pred_fallthru
          _
      $region106: #{tpu_custom_call.1} parent=5 // pred_fallthru
        _
    $region6: #{tpu_custom_call.1} parent=1 // loop_footer
      %s21 = sadd.s32 1, %s17
    $region7: #{tpu_custom_call.1} parent=1 // loop_footer_branch
      %16 = sbr.rel target = $region3
    $region8: #{tpu_custom_call.1} parent=1 // loop_exit
      _
    %1647 = vsyncpa [#allocation5], 1
    %s1648 = scalar_lea.sflag [#allocation5], 1
    %1649 = vsyncpa %s1648, 1

</llo_original>
